<compile_context>
chip_gen: v5e
topology: v5e:2x2
jax: 0.10.0
libtpu: 0.0.40
codegen_flags: <defaults>
</compile_context>

<pallas_src>
from functools import partial

import jax
import jax.numpy as jnp
from jax.experimental import pallas as pl
from jax.experimental.pallas import tpu as pltpu


# ----------------------------- kernel helpers ------------------------------

def _layer_norm(x, gamma, beta, eps=1e-5):
    # x: (N, D) f32, gamma/beta: (1, D) f32
    mean = jnp.mean(x, axis=-1, keepdims=True)
    var = jnp.mean((x - mean) ** 2, axis=-1, keepdims=True)
    return (x - mean) * jax.lax.rsqrt(var + eps) * gamma + beta


def decoder_kernel(num_heads,
                   # inputs
                   x_ref,
                   ln1_g_ref, ln1_b_ref, wqkv_ref, bqkv_ref, wo_ref, bo_ref,
                   ln2_g_ref, ln2_b_ref, w1_ref, b1_ref, w2_ref, b2_ref,
                   lnf_g_ref, lnf_b_ref, wout_ref, bout_ref,
                   # output
                   o_ref,
                   # scratch
                   acc_ref):
    l = pl.program_id(1)
    num_l = pl.num_programs(1)

    # Load the batch row into the resident VMEM accumulator on the first layer.
    @pl.when(l == 0)
    def _():
        acc_ref[...] = x_ref[0].astype(jnp.float32)

    x = acc_ref[...]                           # (N, D) f32
    N, D = x.shape
    H = num_heads
    hd = D // H
    scale = 1.0 / float(hd) ** 0.5

    # ------------------ multi-head self-attention (pre-norm) ----------------
    h = _layer_norm(x, ln1_g_ref[0], ln1_b_ref[0])
    qkv = jnp.dot(h.astype(jnp.bfloat16), wqkv_ref[0],
                  preferred_element_type=jnp.float32) + bqkv_ref[0]   # (N, 3D)
    wo = wo_ref[0]                              # (D, D) bf16

    attn = jnp.zeros((N, D), jnp.float32)
    for hi in range(H):                         # static unrolled loop
        qs = qkv[:, hi * hd:(hi + 1) * hd].astype(jnp.bfloat16)
        ks = qkv[:, D + hi * hd:D + (hi + 1) * hd].astype(jnp.bfloat16)
        vs = qkv[:, 2 * D + hi * hd:2 * D + (hi + 1) * hd].astype(jnp.bfloat16)
        # q . k^T without an explicit transpose: contract on the head dim.
        s = jax.lax.dot_general(qs, ks, (((1,), (1,)), ((), ())),
                                preferred_element_type=jnp.float32) * scale
        s = s - jnp.max(s, axis=-1, keepdims=True)
        p = jnp.exp(s)
        p = p * pl.reciprocal(jnp.sum(p, axis=-1, keepdims=True), approx=True)
        ctx = jnp.dot(p.astype(jnp.bfloat16), vs,
                      preferred_element_type=jnp.float32)             # (N, hd)
        # Fold the output projection per head (no lane-axis concatenate).
        attn = attn + jnp.dot(ctx.astype(jnp.bfloat16),
                              wo[hi * hd:(hi + 1) * hd, :],
                              preferred_element_type=jnp.float32)
    x = x + attn + bo_ref[0]

    # ------------------------------ MLP (pre-norm) ---------------------------
    h = _layer_norm(x, ln2_g_ref[0], ln2_b_ref[0])
    h = jnp.dot(h.astype(jnp.bfloat16), w1_ref[0],
                preferred_element_type=jnp.float32) + b1_ref[0]
    # TODO(synk): PyTorch nn.GELU defaults to exact erf; tanh approximation is
    # used here (EUP-friendly), outputs differ slightly.
    h = jax.nn.gelu(h, approximate=True)
    h = jnp.dot(h.astype(jnp.bfloat16), w2_ref[0],
                preferred_element_type=jnp.float32) + b2_ref[0]
    x = x + h
    acc_ref[...] = x

    # ---------------- final LayerNorm + output projection (last layer) ------
    @pl.when(l == num_l - 1)
    def _():
        hf = _layer_norm(x, lnf_g_ref[...], lnf_b_ref[...])
        out = jnp.dot(hf.astype(jnp.bfloat16), wout_ref[...],
                      preferred_element_type=jnp.float32) + bout_ref[...]
        o_ref[0] = out.astype(o_ref.dtype)      # lane-dense (N, P_pad) store


# ------------------------------ python wrapper -------------------------------

_LAYER_KEYS = ("ln1_g", "ln1_b", "wqkv", "bqkv", "wo", "bo",
               "ln2_g", "ln2_b", "w1", "b1", "w2", "b2")
_HEAD_KEYS = ("lnf_g", "lnf_b", "w_out", "b_out")


def decoder_forward(patch_embeddings, params, *, out_channels, patch_size, num_heads):
    B, N, D = patch_embeddings.shape
    L = params["wqkv"].shape[0]
    P = out_channels * patch_size ** 2
    P_pad = params["w_out"].shape[-1]

    layer_ws = [params[k] for k in _LAYER_KEYS]
    head_ws = [params[k] for k in _HEAD_KEYS]

    def layer_spec(w):
        nd = w.ndim
        return pl.BlockSpec((1,) + w.shape[1:],
                            lambda b, l, _nd=nd: (l,) + (0,) * (_nd - 1))

    def full_spec(w):
        nd = w.ndim
        return pl.BlockSpec(w.shape, lambda b, l, _nd=nd: (0,) * _nd)

    in_specs = ([pl.BlockSpec((1, N, D), lambda b, l: (b, 0, 0))]
                + [layer_spec(w) for w in layer_ws]
                + [full_spec(w) for w in head_ws])

    out = pl.pallas_call(
        partial(decoder_kernel, num_heads),
        out_shape=jax.ShapeDtypeStruct((B, N, P_pad), patch_embeddings.dtype),
        grid=(B, L),
        in_specs=in_specs,
        out_specs=pl.BlockSpec((1, N, P_pad), lambda b, l: (b, 0, 0)),
        scratch_shapes=[pltpu.VMEM((N, D), jnp.float32)],
        compiler_params=pltpu.CompilerParams(
            dimension_semantics=("parallel", "arbitrary")),
    )(patch_embeddings, *layer_ws, *head_ws)

    # Drop the lane padding and reshape to (B, N, C, ps, ps).
    return out[:, :, :P].reshape(B, N, out_channels, patch_size, patch_size)


# ----------------------------- parameter init --------------------------------

def init_params(key, hidden_dim, mlp_dim, num_layers, out_channels, patch_size):
    D, M, L = hidden_dim, mlp_dim, num_layers
    P = out_channels * patch_size ** 2
    P_pad = ((P + 127) // 128) * 128

    def dense_w(k, shape, fan_in):
        return jax.random.normal(k, shape, jnp.float32) * (1.0 / fan_in ** 0.5)

    ks = jax.random.split(key, 5)
    wqkv = dense_w(ks[0], (L, D, 3 * D), D).astype(jnp.bfloat16)
    wo = dense_w(ks[1], (L, D, D), D).astype(jnp.bfloat16)
    w1 = dense_w(ks[2], (L, D, M), D).astype(jnp.bfloat16)
    w2 = dense_w(ks[3], (L, M, D), M).astype(jnp.bfloat16)

    w_out_core = dense_w(ks[4], (D, P), D)
    w_out = jnp.zeros((D, P_pad), jnp.float32).at[:, :P].set(w_out_core)
    w_out = w_out.astype(jnp.bfloat16)

    return dict(
        ln1_g=jnp.ones((L, 1, D), jnp.float32),
        ln1_b=jnp.zeros((L, 1, D), jnp.float32),
        wqkv=wqkv, bqkv=jnp.zeros((L, 1, 3 * D), jnp.float32),
        wo=wo, bo=jnp.zeros((L, 1, D), jnp.float32),
        ln2_g=jnp.ones((L, 1, D), jnp.float32),
        ln2_b=jnp.zeros((L, 1, D), jnp.float32),
        w1=w1, b1=jnp.zeros((L, 1, M), jnp.float32),
        w2=w2, b2=jnp.zeros((L, 1, D), jnp.float32),
        lnf_g=jnp.ones((1, D), jnp.float32),
        lnf_b=jnp.zeros((1, D), jnp.float32),
        w_out=w_out, b_out=jnp.zeros((1, P_pad), jnp.float32),
    )


# ----------------------------------- main -------------------------------------

if __name__ == "__main__":
    # Small shapes consistent with the module.
    B, N = 2, 8                    # batch, num patches
    hidden_dim = 32
    mlp_dim = 64
    num_heads = 4
    num_layers = 2
    out_channels = 3
    patch_size = 5

    key = jax.random.PRNGKey(0)
    k_x, k_p = jax.random.split(key)
    patch_embeddings = jax.random.normal(k_x, (B, N, hidden_dim), jnp.float32)
    params = init_params(k_p, hidden_dim, mlp_dim, num_layers,
                         out_channels, patch_size)

    fwd = jax.jit(partial(decoder_forward,
                          out_channels=out_channels,
                          patch_size=patch_size,
                          num_heads=num_heads))
    out = fwd(patch_embeddings, params)
    out = jax.block_until_ready(out)

    assert out.shape == (B, N, out_channels, patch_size, patch_size), out.shape
    assert bool(jnp.all(jnp.isfinite(out)))
    print("KERNEL_OK")
</pallas_src>

<mosaic_0001>
module attributes {stable_mosaic.version = 11 : i64} {
  func.func @decoder_kernel(%arg0: i32, %arg1: i32, %arg2: memref<1x8x32xf32, #tpu.memory_space<vmem>>, %arg3: memref<1x1x32xf32, #tpu.memory_space<vmem>>, %arg4: memref<1x1x32xf32, #tpu.memory_space<vmem>>, %arg5: memref<1x32x96xbf16, #tpu.memory_space<vmem>>, %arg6: memref<1x1x96xf32, #tpu.memory_space<vmem>>, %arg7: memref<1x32x32xbf16, #tpu.memory_space<vmem>>, %arg8: memref<1x1x32xf32, #tpu.memory_space<vmem>>, %arg9: memref<1x1x32xf32, #tpu.memory_space<vmem>>, %arg10: memref<1x1x32xf32, #tpu.memory_space<vmem>>, %arg11: memref<1x32x64xbf16, #tpu.memory_space<vmem>>, %arg12: memref<1x1x64xf32, #tpu.memory_space<vmem>>, %arg13: memref<1x64x32xbf16, #tpu.memory_space<vmem>>, %arg14: memref<1x1x32xf32, #tpu.memory_space<vmem>>, %arg15: memref<1x32xf32, #tpu.memory_space<vmem>>, %arg16: memref<1x32xf32, #tpu.memory_space<vmem>>, %arg17: memref<32x128xbf16, #tpu.memory_space<vmem>>, %arg18: memref<1x128xf32, #tpu.memory_space<vmem>>, %arg19: memref<1x8x128xf32, #tpu.memory_space<vmem>>, %arg20: memref<8x32xf32, #tpu.memory_space<vmem>>) attributes {dimension_semantics = [#tpu.dimension_semantics<parallel>, #tpu.dimension_semantics<arbitrary>], iteration_bounds = array<i64: 2, 2>, scalar_prefetch = 0 : i64, scratch_operands = 1 : i64, tpu.core_type = #tpu.core_type<tc>, window_params = [{transform_indices = @transform_0, window_bounds = array<i64: 1, 8, 32>}, {transform_indices = @transform_1, window_bounds = array<i64: 1, 1, 32>}, {transform_indices = @transform_2, window_bounds = array<i64: 1, 1, 32>}, {transform_indices = @transform_3, window_bounds = array<i64: 1, 32, 96>}, {transform_indices = @transform_4, window_bounds = array<i64: 1, 1, 96>}, {transform_indices = @transform_5, window_bounds = array<i64: 1, 32, 32>}, {transform_indices = @transform_6, window_bounds = array<i64: 1, 1, 32>}, {transform_indices = @transform_7, window_bounds = array<i64: 1, 1, 32>}, {transform_indices = @transform_8, window_bounds = array<i64: 1, 1, 32>}, {transform_indices = @transform_9, window_bounds = array<i64: 1, 32, 64>}, {transform_indices = @transform_10, window_bounds = array<i64: 1, 1, 64>}, {transform_indices = @transform_11, window_bounds = array<i64: 1, 64, 32>}, {transform_indices = @transform_12, window_bounds = array<i64: 1, 1, 32>}, {pipeline_mode = #tpu.pipeline_mode<synchronous>, transform_indices = @transform_13, window_bounds = array<i64: 1, 32>}, {pipeline_mode = #tpu.pipeline_mode<synchronous>, transform_indices = @transform_14, window_bounds = array<i64: 1, 32>}, {pipeline_mode = #tpu.pipeline_mode<synchronous>, transform_indices = @transform_15, window_bounds = array<i64: 32, 128>}, {pipeline_mode = #tpu.pipeline_mode<synchronous>, transform_indices = @transform_16, window_bounds = array<i64: 1, 128>}, {transform_indices = @transform_17, window_bounds = array<i64: 1, 8, 128>}]} {
    %c0_i32 = arith.constant 0 : i32
    %0 = arith.cmpi eq, %arg1, %c0_i32 : i32
    %1 = arith.extui %0 : i1 to i32
    %c0_i32_0 = arith.constant 0 : i32
    %2 = arith.cmpi ne, %1, %c0_i32_0 : i32
    scf.if %2 {
      %c0_82 = arith.constant 0 : index
      %c0_83 = arith.constant 0 : index
      %c0_84 = arith.constant 0 : index
      %206 = vector.load %arg2[%c0_82, %c0_83, %c0_84] : memref<1x8x32xf32, #tpu.memory_space<vmem>>, vector<1x8x32xf32>
      %207 = vector.shape_cast %206 : vector<1x8x32xf32> to vector<8x32xf32>
      %c0_85 = arith.constant 0 : index
      %c0_86 = arith.constant 0 : index
      %208 = vector.load %arg20[%c0_85, %c0_86] : memref<8x32xf32, #tpu.memory_space<vmem>>, vector<8x32xf32>
      tpu.vector_store %arg20[%c0_85, %c0_86], %207 {strides = array<i32>} : memref<8x32xf32, #tpu.memory_space<vmem>>, vector<8x32xf32>,
    } else {
    }
    %c0 = arith.constant 0 : index
    %c0_1 = arith.constant 0 : index
    %3 = vector.load %arg20[%c0, %c0_1] : memref<8x32xf32, #tpu.memory_space<vmem>>, vector<8x32xf32>
    %c0_2 = arith.constant 0 : index
    %c0_3 = arith.constant 0 : index
    %c0_4 = arith.constant 0 : index
    %4 = vector.load %arg3[%c0_2, %c0_3, %c0_4] : memref<1x1x32xf32, #tpu.memory_space<vmem>>, vector<1x1x32xf32>
    %5 = vector.shape_cast %4 : vector<1x1x32xf32> to vector<1x32xf32>
    %c0_5 = arith.constant 0 : index
    %c0_6 = arith.constant 0 : index
    %c0_7 = arith.constant 0 : index
    %6 = vector.load %arg4[%c0_5, %c0_6, %c0_7] : memref<1x1x32xf32, #tpu.memory_space<vmem>>, vector<1x1x32xf32>
    %7 = vector.shape_cast %6 : vector<1x1x32xf32> to vector<1x32xf32>
    %cst = arith.constant dense<0.000000e+00> : vector<8xf32>
    %8 = vector.multi_reduction <add>, %3, %cst [1] : vector<8x32xf32> to vector<8xf32>
    %9 = vector.shape_cast %8 : vector<8xf32> to vector<8x1xf32>
    %cst_8 = arith.constant 3.200000e+01 : f32
    %10 = vector.broadcast %cst_8 : f32 to vector<8x1xf32>
    %11 = arith.divf %9, %10 : vector<8x1xf32>
    %12 = vector.broadcast %11 : vector<8x1xf32> to vector<8x32xf32>
    %13 = arith.subf %3, %12 : vector<8x32xf32>
    %14 = arith.mulf %13, %13 : vector<8x32xf32>
    %cst_9 = arith.constant dense<0.000000e+00> : vector<8xf32>
    %15 = vector.multi_reduction <add>, %14, %cst_9 [1] : vector<8x32xf32> to vector<8xf32>
    %16 = vector.shape_cast %15 : vector<8xf32> to vector<8x1xf32>
    %cst_10 = arith.constant 3.200000e+01 : f32
    %17 = vector.broadcast %cst_10 : f32 to vector<8x1xf32>
    %18 = arith.divf %16, %17 : vector<8x1xf32>
    %19 = vector.broadcast %11 : vector<8x1xf32> to vector<8x32xf32>
    %20 = arith.subf %3, %19 : vector<8x32xf32>
    %cst_11 = arith.constant 9.99999974E-6 : f32
    %21 = vector.broadcast %cst_11 : f32 to vector<8x1xf32>
    %22 = arith.addf %18, %21 : vector<8x1xf32>
    %23 = math.rsqrt %22 : vector<8x1xf32>
    %24 = vector.broadcast %23 : vector<8x1xf32> to vector<8x32xf32>
    %25 = arith.mulf %20, %24 : vector<8x32xf32>
    %26 = vector.broadcast %5 : vector<1x32xf32> to vector<8x32xf32>
    %27 = arith.mulf %25, %26 : vector<8x32xf32>
    %28 = vector.broadcast %7 : vector<1x32xf32> to vector<8x32xf32>
    %29 = arith.addf %27, %28 : vector<8x32xf32>
    %30 = arith.truncf %29 : vector<8x32xf32> to vector<8x32xbf16>
    %c0_12 = arith.constant 0 : index
    %c0_13 = arith.constant 0 : index
    %c0_14 = arith.constant 0 : index
    %31 = vector.load %arg5[%c0_12, %c0_13, %c0_14] : memref<1x32x96xbf16, #tpu.memory_space<vmem>>, vector<1x32x96xbf16>
    %32 = vector.shape_cast %31 : vector<1x32x96xbf16> to vector<32x96xbf16>
    %cst_15 = arith.constant dense<0.000000e+00> : vector<8x96xf32>
    %33 = tpu.matmul %30, %32, %cst_15 {dimension_numbers = #tpu.dot_dimension_numbers<[1], [0], [0], [1], [0, 0, 1, 1], [], []>} : vector<8x32xbf16>, vector<32x96xbf16>, vector<8x96xf32> -> vector<8x96xf32>
    %c0_16 = arith.constant 0 : index
    %c0_17 = arith.constant 0 : index
    %c0_18 = arith.constant 0 : index
    %34 = vector.load %arg6[%c0_16, %c0_17, %c0_18] : memref<1x1x96xf32, #tpu.memory_space<vmem>>, vector<1x1x96xf32>
    %35 = vector.shape_cast %34 : vector<1x1x96xf32> to vector<1x96xf32>
    %36 = vector.broadcast %35 : vector<1x96xf32> to vector<8x96xf32>
    %37 = arith.addf %33, %36 : vector<8x96xf32>
    %c0_19 = arith.constant 0 : index
    %c0_20 = arith.constant 0 : index
    %c0_21 = arith.constant 0 : index
    %38 = vector.load %arg7[%c0_19, %c0_20, %c0_21] : memref<1x32x32xbf16, #tpu.memory_space<vmem>>, vector<1x32x32xbf16>
    %39 = vector.shape_cast %38 : vector<1x32x32xbf16> to vector<32x32xbf16>
    %cst_22 = arith.constant 0.000000e+00 : f32
    %40 = vector.broadcast %cst_22 : f32 to vector<8x32xf32>
    %41 = vector.extract_strided_slice %37 {offsets = [0, 0], sizes = [8, 8], strides = [1, 1]} : vector<8x96xf32> to vector<8x8xf32>
    %42 = arith.truncf %41 : vector<8x8xf32> to vector<8x8xbf16>
    %43 = vector.extract_strided_slice %37 {offsets = [0, 32], sizes = [8, 8], strides = [1, 1]} : vector<8x96xf32> to vector<8x8xf32>
    %44 = arith.truncf %43 : vector<8x8xf32> to vector<8x8xbf16>
    %45 = vector.extract_strided_slice %37 {offsets = [0, 64], sizes = [8, 8], strides = [1, 1]} : vector<8x96xf32> to vector<8x8xf32>
    %46 = arith.truncf %45 : vector<8x8xf32> to vector<8x8xbf16>
    %cst_23 = arith.constant dense<0.000000e+00> : vector<8x8xf32>
    %47 = tpu.matmul %42, %44, %cst_23 {dimension_numbers = #tpu.dot_dimension_numbers<[1], [1], [0], [0], [0, 0, 1, 0], [], []>} : vector<8x8xbf16>, vector<8x8xbf16>, vector<8x8xf32> -> vector<8x8xf32>
    %cst_24 = arith.constant 0.353553385 : f32
    %48 = vector.broadcast %cst_24 : f32 to vector<8x8xf32>
    %49 = arith.mulf %47, %48 : vector<8x8xf32>
    %cst_25 = arith.constant dense<0xFF800000> : vector<8xf32>
    %50 = vector.multi_reduction <maximumf>, %49, %cst_25 [1] : vector<8x8xf32> to vector<8xf32>
    %51 = vector.shape_cast %50 : vector<8xf32> to vector<8x1xf32>
    %52 = vector.broadcast %51 : vector<8x1xf32> to vector<8x8xf32>
    %53 = arith.subf %49, %52 : vector<8x8xf32>
    %54 = math.exp %53 : vector<8x8xf32>
    %cst_26 = arith.constant dense<0.000000e+00> : vector<8xf32>
    %55 = vector.multi_reduction <add>, %54, %cst_26 [1] : vector<8x8xf32> to vector<8xf32>
    %56 = vector.shape_cast %55 : vector<8xf32> to vector<8x1xf32>
    %57 = tpu.reciprocal %56 {approx = true} : vector<8x1xf32> -> vector<8x1xf32>
    %58 = vector.broadcast %57 : vector<8x1xf32> to vector<8x8xf32>
    %59 = arith.mulf %54, %58 : vector<8x8xf32>
    %60 = arith.truncf %59 : vector<8x8xf32> to vector<8x8xbf16>
    %cst_27 = arith.constant dense<0.000000e+00> : vector<8x8xf32>
    %61 = tpu.matmul %60, %46, %cst_27 {dimension_numbers = #tpu.dot_dimension_numbers<[1], [0], [0], [1], [0, 0, 1, 1], [], []>} : vector<8x8xbf16>, vector<8x8xbf16>, vector<8x8xf32> -> vector<8x8xf32>
    %62 = arith.truncf %61 : vector<8x8xf32> to vector<8x8xbf16>
    %63 = vector.extract_strided_slice %39 {offsets = [0, 0], sizes = [8, 32], strides = [1, 1]} : vector<32x32xbf16> to vector<8x32xbf16>
    %cst_28 = arith.constant dense<0.000000e+00> : vector<8x32xf32>
    %64 = tpu.matmul %62, %63, %cst_28 {dimension_numbers = #tpu.dot_dimension_numbers<[1], [0], [0], [1], [0, 0, 1, 1], [], []>} : vector<8x8xbf16>, vector<8x32xbf16>, vector<8x32xf32> -> vector<8x32xf32>
    %65 = arith.addf %40, %64 : vector<8x32xf32>
    %66 = vector.extract_strided_slice %37 {offsets = [0, 8], sizes = [8, 8], strides = [1, 1]} : vector<8x96xf32> to vector<8x8xf32>
    %67 = arith.truncf %66 : vector<8x8xf32> to vector<8x8xbf16>
    %68 = vector.extract_strided_slice %37 {offsets = [0, 40], sizes = [8, 8], strides = [1, 1]} : vector<8x96xf32> to vector<8x8xf32>
    %69 = arith.truncf %68 : vector<8x8xf32> to vector<8x8xbf16>
    %70 = vector.extract_strided_slice %37 {offsets = [0, 72], sizes = [8, 8], strides = [1, 1]} : vector<8x96xf32> to vector<8x8xf32>
    %71 = arith.truncf %70 : vector<8x8xf32> to vector<8x8xbf16>
    %cst_29 = arith.constant dense<0.000000e+00> : vector<8x8xf32>
    %72 = tpu.matmul %67, %69, %cst_29 {dimension_numbers = #tpu.dot_dimension_numbers<[1], [1], [0], [0], [0, 0, 1, 0], [], []>} : vector<8x8xbf16>, vector<8x8xbf16>, vector<8x8xf32> -> vector<8x8xf32>
    %cst_30 = arith.constant 0.353553385 : f32
    %73 = vector.broadcast %cst_30 : f32 to vector<8x8xf32>
    %74 = arith.mulf %72, %73 : vector<8x8xf32>
    %cst_31 = arith.constant dense<0xFF800000> : vector<8xf32>
    %75 = vector.multi_reduction <maximumf>, %74, %cst_31 [1] : vector<8x8xf32> to vector<8xf32>
    %76 = vector.shape_cast %75 : vector<8xf32> to vector<8x1xf32>
    %77 = vector.broadcast %76 : vector<8x1xf32> to vector<8x8xf32>
    %78 = arith.subf %74, %77 : vector<8x8xf32>
    %79 = math.exp %78 : vector<8x8xf32>
    %cst_32 = arith.constant dense<0.000000e+00> : vector<8xf32>
    %80 = vector.multi_reduction <add>, %79, %cst_32 [1] : vector<8x8xf32> to vector<8xf32>
    %81 = vector.shape_cast %80 : vector<8xf32> to vector<8x1xf32>
    %82 = tpu.reciprocal %81 {approx = true} : vector<8x1xf32> -> vector<8x1xf32>
    %83 = vector.broadcast %82 : vector<8x1xf32> to vector<8x8xf32>
    %84 = arith.mulf %79, %83 : vector<8x8xf32>
    %85 = arith.truncf %84 : vector<8x8xf32> to vector<8x8xbf16>
    %cst_33 = arith.constant dense<0.000000e+00> : vector<8x8xf32>
    %86 = tpu.matmul %85, %71, %cst_33 {dimension_numbers = #tpu.dot_dimension_numbers<[1], [0], [0], [1], [0, 0, 1, 1], [], []>} : vector<8x8xbf16>, vector<8x8xbf16>, vector<8x8xf32> -> vector<8x8xf32>
    %87 = arith.truncf %86 : vector<8x8xf32> to vector<8x8xbf16>
    %88 = vector.extract_strided_slice %39 {offsets = [8, 0], sizes = [8, 32], strides = [1, 1]} : vector<32x32xbf16> to vector<8x32xbf16>
    %cst_34 = arith.constant dense<0.000000e+00> : vector<8x32xf32>
    %89 = tpu.matmul %87, %88, %cst_34 {dimension_numbers = #tpu.dot_dimension_numbers<[1], [0], [0], [1], [0, 0, 1, 1], [], []>} : vector<8x8xbf16>, vector<8x32xbf16>, vector<8x32xf32> -> vector<8x32xf32>
    %90 = arith.addf %65, %89 : vector<8x32xf32>
    %91 = vector.extract_strided_slice %37 {offsets = [0, 16], sizes = [8, 8], strides = [1, 1]} : vector<8x96xf32> to vector<8x8xf32>
    %92 = arith.truncf %91 : vector<8x8xf32> to vector<8x8xbf16>
    %93 = vector.extract_strided_slice %37 {offsets = [0, 48], sizes = [8, 8], strides = [1, 1]} : vector<8x96xf32> to vector<8x8xf32>
    %94 = arith.truncf %93 : vector<8x8xf32> to vector<8x8xbf16>
    %95 = vector.extract_strided_slice %37 {offsets = [0, 80], sizes = [8, 8], strides = [1, 1]} : vector<8x96xf32> to vector<8x8xf32>
    %96 = arith.truncf %95 : vector<8x8xf32> to vector<8x8xbf16>
    %cst_35 = arith.constant dense<0.000000e+00> : vector<8x8xf32>
    %97 = tpu.matmul %92, %94, %cst_35 {dimension_numbers = #tpu.dot_dimension_numbers<[1], [1], [0], [0], [0, 0, 1, 0], [], []>} : vector<8x8xbf16>, vector<8x8xbf16>, vector<8x8xf32> -> vector<8x8xf32>
    %cst_36 = arith.constant 0.353553385 : f32
    %98 = vector.broadcast %cst_36 : f32 to vector<8x8xf32>
    %99 = arith.mulf %97, %98 : vector<8x8xf32>
    %cst_37 = arith.constant dense<0xFF800000> : vector<8xf32>
    %100 = vector.multi_reduction <maximumf>, %99, %cst_37 [1] : vector<8x8xf32> to vector<8xf32>
    %101 = vector.shape_cast %100 : vector<8xf32> to vector<8x1xf32>
    %102 = vector.broadcast %101 : vector<8x1xf32> to vector<8x8xf32>
    %103 = arith.subf %99, %102 : vector<8x8xf32>
    %104 = math.exp %103 : vector<8x8xf32>
    %cst_38 = arith.constant dense<0.000000e+00> : vector<8xf32>
    %105 = vector.multi_reduction <add>, %104, %cst_38 [1] : vector<8x8xf32> to vector<8xf32>
    %106 = vector.shape_cast %105 : vector<8xf32> to vector<8x1xf32>
    %107 = tpu.reciprocal %106 {approx = true} : vector<8x1xf32> -> vector<8x1xf32>
    %108 = vector.broadcast %107 : vector<8x1xf32> to vector<8x8xf32>
    %109 = arith.mulf %104, %108 : vector<8x8xf32>
    %110 = arith.truncf %109 : vector<8x8xf32> to vector<8x8xbf16>
    %cst_39 = arith.constant dense<0.000000e+00> : vector<8x8xf32>
    %111 = tpu.matmul %110, %96, %cst_39 {dimension_numbers = #tpu.dot_dimension_numbers<[1], [0], [0], [1], [0, 0, 1, 1], [], []>} : vector<8x8xbf16>, vector<8x8xbf16>, vector<8x8xf32> -> vector<8x8xf32>
    %112 = arith.truncf %111 : vector<8x8xf32> to vector<8x8xbf16>
    %113 = vector.extract_strided_slice %39 {offsets = [16, 0], sizes = [8, 32], strides = [1, 1]} : vector<32x32xbf16> to vector<8x32xbf16>
    %cst_40 = arith.constant dense<0.000000e+00> : vector<8x32xf32>
    %114 = tpu.matmul %112, %113, %cst_40 {dimension_numbers = #tpu.dot_dimension_numbers<[1], [0], [0], [1], [0, 0, 1, 1], [], []>} : vector<8x8xbf16>, vector<8x32xbf16>, vector<8x32xf32> -> vector<8x32xf32>
    %115 = arith.addf %90, %114 : vector<8x32xf32>
    %116 = vector.extract_strided_slice %37 {offsets = [0, 24], sizes = [8, 8], strides = [1, 1]} : vector<8x96xf32> to vector<8x8xf32>
    %117 = arith.truncf %116 : vector<8x8xf32> to vector<8x8xbf16>
    %118 = vector.extract_strided_slice %37 {offsets = [0, 56], sizes = [8, 8], strides = [1, 1]} : vector<8x96xf32> to vector<8x8xf32>
    %119 = arith.truncf %118 : vector<8x8xf32> to vector<8x8xbf16>
    %120 = vector.extract_strided_slice %37 {offsets = [0, 88], sizes = [8, 8], strides = [1, 1]} : vector<8x96xf32> to vector<8x8xf32>
    %121 = arith.truncf %120 : vector<8x8xf32> to vector<8x8xbf16>
    %cst_41 = arith.constant dense<0.000000e+00> : vector<8x8xf32>
    %122 = tpu.matmul %117, %119, %cst_41 {dimension_numbers = #tpu.dot_dimension_numbers<[1], [1], [0], [0], [0, 0, 1, 0], [], []>} : vector<8x8xbf16>, vector<8x8xbf16>, vector<8x8xf32> -> vector<8x8xf32>
    %cst_42 = arith.constant 0.353553385 : f32
    %123 = vector.broadcast %cst_42 : f32 to vector<8x8xf32>
    %124 = arith.mulf %122, %123 : vector<8x8xf32>
    %cst_43 = arith.constant dense<0xFF800000> : vector<8xf32>
    %125 = vector.multi_reduction <maximumf>, %124, %cst_43 [1] : vector<8x8xf32> to vector<8xf32>
    %126 = vector.shape_cast %125 : vector<8xf32> to vector<8x1xf32>
    %127 = vector.broadcast %126 : vector<8x1xf32> to vector<8x8xf32>
    %128 = arith.subf %124, %127 : vector<8x8xf32>
    %129 = math.exp %128 : vector<8x8xf32>
    %cst_44 = arith.constant dense<0.000000e+00> : vector<8xf32>
    %130 = vector.multi_reduction <add>, %129, %cst_44 [1] : vector<8x8xf32> to vector<8xf32>
    %131 = vector.shape_cast %130 : vector<8xf32> to vector<8x1xf32>
    %132 = tpu.reciprocal %131 {approx = true} : vector<8x1xf32> -> vector<8x1xf32>
    %133 = vector.broadcast %132 : vector<8x1xf32> to vector<8x8xf32>
    %134 = arith.mulf %129, %133 : vector<8x8xf32>
    %135 = arith.truncf %134 : vector<8x8xf32> to vector<8x8xbf16>
    %cst_45 = arith.constant dense<0.000000e+00> : vector<8x8xf32>
    %136 = tpu.matmul %135, %121, %cst_45 {dimension_numbers = #tpu.dot_dimension_numbers<[1], [0], [0], [1], [0, 0, 1, 1], [], []>} : vector<8x8xbf16>, vector<8x8xbf16>, vector<8x8xf32> -> vector<8x8xf32>
    %137 = arith.truncf %136 : vector<8x8xf32> to vector<8x8xbf16>
    %138 = vector.extract_strided_slice %39 {offsets = [24, 0], sizes = [8, 32], strides = [1, 1]} : vector<32x32xbf16> to vector<8x32xbf16>
    %cst_46 = arith.constant dense<0.000000e+00> : vector<8x32xf32>
    %139 = tpu.matmul %137, %138, %cst_46 {dimension_numbers = #tpu.dot_dimension_numbers<[1], [0], [0], [1], [0, 0, 1, 1], [], []>} : vector<8x8xbf16>, vector<8x32xbf16>, vector<8x32xf32> -> vector<8x32xf32>
    %140 = arith.addf %115, %139 : vector<8x32xf32>
    %141 = arith.addf %3, %140 : vector<8x32xf32>
    %c0_47 = arith.constant 0 : index
    %c0_48 = arith.constant 0 : index
    %c0_49 = arith.constant 0 : index
    %142 = vector.load %arg8[%c0_47, %c0_48, %c0_49] : memref<1x1x32xf32, #tpu.memory_space<vmem>>, vector<1x1x32xf32>
    %143 = vector.shape_cast %142 : vector<1x1x32xf32> to vector<1x32xf32>
    %144 = vector.broadcast %143 : vector<1x32xf32> to vector<8x32xf32>
    %145 = arith.addf %141, %144 : vector<8x32xf32>
    %c0_50 = arith.constant 0 : index
    %c0_51 = arith.constant 0 : index
    %c0_52 = arith.constant 0 : index
    %146 = vector.load %arg9[%c0_50, %c0_51, %c0_52] : memref<1x1x32xf32, #tpu.memory_space<vmem>>, vector<1x1x32xf32>
    %147 = vector.shape_cast %146 : vector<1x1x32xf32> to vector<1x32xf32>
    %c0_53 = arith.constant 0 : index
    %c0_54 = arith.constant 0 : index
    %c0_55 = arith.constant 0 : index
    %148 = vector.load %arg10[%c0_53, %c0_54, %c0_55] : memref<1x1x32xf32, #tpu.memory_space<vmem>>, vector<1x1x32xf32>
    %149 = vector.shape_cast %148 : vector<1x1x32xf32> to vector<1x32xf32>
    %cst_56 = arith.constant dense<0.000000e+00> : vector<8xf32>
    %150 = vector.multi_reduction <add>, %145, %cst_56 [1] : vector<8x32xf32> to vector<8xf32>
    %151 = vector.shape_cast %150 : vector<8xf32> to vector<8x1xf32>
    %cst_57 = arith.constant 3.200000e+01 : f32
    %152 = vector.broadcast %cst_57 : f32 to vector<8x1xf32>
    %153 = arith.divf %151, %152 : vector<8x1xf32>
    %154 = vector.broadcast %153 : vector<8x1xf32> to vector<8x32xf32>
    %155 = arith.subf %145, %154 : vector<8x32xf32>
    %156 = arith.mulf %155, %155 : vector<8x32xf32>
    %cst_58 = arith.constant dense<0.000000e+00> : vector<8xf32>
    %157 = vector.multi_reduction <add>, %156, %cst_58 [1] : vector<8x32xf32> to vector<8xf32>
    %158 = vector.shape_cast %157 : vector<8xf32> to vector<8x1xf32>
    %cst_59 = arith.constant 3.200000e+01 : f32
    %159 = vector.broadcast %cst_59 : f32 to vector<8x1xf32>
    %160 = arith.divf %158, %159 : vector<8x1xf32>
    %161 = vector.broadcast %153 : vector<8x1xf32> to vector<8x32xf32>
    %162 = arith.subf %145, %161 : vector<8x32xf32>
    %cst_60 = arith.constant 9.99999974E-6 : f32
    %163 = vector.broadcast %cst_60 : f32 to vector<8x1xf32>
    %164 = arith.addf %160, %163 : vector<8x1xf32>
    %165 = math.rsqrt %164 : vector<8x1xf32>
    %166 = vector.broadcast %165 : vector<8x1xf32> to vector<8x32xf32>
    %167 = arith.mulf %162, %166 : vector<8x32xf32>
    %168 = vector.broadcast %147 : vector<1x32xf32> to vector<8x32xf32>
    %169 = arith.mulf %167, %168 : vector<8x32xf32>
    %170 = vector.broadcast %149 : vector<1x32xf32> to vector<8x32xf32>
    %171 = arith.addf %169, %170 : vector<8x32xf32>
    %172 = arith.truncf %171 : vector<8x32xf32> to vector<8x32xbf16>
    %c0_61 = arith.constant 0 : index
    %c0_62 = arith.constant 0 : index
    %c0_63 = arith.constant 0 : index
    %173 = vector.load %arg11[%c0_61, %c0_62, %c0_63] : memref<1x32x64xbf16, #tpu.memory_space<vmem>>, vector<1x32x64xbf16>
    %174 = vector.shape_cast %173 : vector<1x32x64xbf16> to vector<32x64xbf16>
    %cst_64 = arith.constant dense<0.000000e+00> : vector<8x64xf32>
    %175 = tpu.matmul %172, %174, %cst_64 {dimension_numbers = #tpu.dot_dimension_numbers<[1], [0], [0], [1], [0, 0, 1, 1], [], []>} : vector<8x32xbf16>, vector<32x64xbf16>, vector<8x64xf32> -> vector<8x64xf32>
    %c0_65 = arith.constant 0 : index
    %c0_66 = arith.constant 0 : index
    %c0_67 = arith.constant 0 : index
    %176 = vector.load %arg12[%c0_65, %c0_66, %c0_67] : memref<1x1x64xf32, #tpu.memory_space<vmem>>, vector<1x1x64xf32>
    %177 = vector.shape_cast %176 : vector<1x1x64xf32> to vector<1x64xf32>
    %178 = vector.broadcast %177 : vector<1x64xf32> to vector<8x64xf32>
    %179 = arith.addf %175, %178 : vector<8x64xf32>
    %180 = arith.mulf %179, %179 : vector<8x64xf32>
    %181 = arith.mulf %179, %180 : vector<8x64xf32>
    %cst_68 = arith.constant 4.471500e-02 : f32
    %182 = vector.broadcast %cst_68 : f32 to vector<8x64xf32>
    %183 = arith.mulf %182, %181 : vector<8x64xf32>
    %184 = arith.addf %179, %183 : vector<8x64xf32>
    %cst_69 = arith.constant 0.797884583 : f32
    %185 = vector.broadcast %cst_69 : f32 to vector<8x64xf32>
    %186 = arith.mulf %185, %184 : vector<8x64xf32>
    %187 = math.tanh %186 : vector<8x64xf32>
    %cst_70 = arith.constant 1.000000e+00 : f32
    %188 = vector.broadcast %cst_70 : f32 to vector<8x64xf32>
    %189 = arith.addf %188, %187 : vector<8x64xf32>
    %cst_71 = arith.constant 5.000000e-01 : f32
    %190 = vector.broadcast %cst_71 : f32 to vector<8x64xf32>
    %191 = arith.mulf %190, %189 : vector<8x64xf32>
    %192 = arith.mulf %179, %191 : vector<8x64xf32>
    %193 = arith.truncf %192 : vector<8x64xf32> to vector<8x64xbf16>
    %c0_72 = arith.constant 0 : index
    %c0_73 = arith.constant 0 : index
    %c0_74 = arith.constant 0 : index
    %194 = vector.load %arg13[%c0_72, %c0_73, %c0_74] : memref<1x64x32xbf16, #tpu.memory_space<vmem>>, vector<1x64x32xbf16>
    %195 = vector.shape_cast %194 : vector<1x64x32xbf16> to vector<64x32xbf16>
    %cst_75 = arith.constant dense<0.000000e+00> : vector<8x32xf32>
    %196 = tpu.matmul %193, %195, %cst_75 {dimension_numbers = #tpu.dot_dimension_numbers<[1], [0], [0], [1], [0, 0, 1, 1], [], []>} : vector<8x64xbf16>, vector<64x32xbf16>, vector<8x32xf32> -> vector<8x32xf32>
    %c0_76 = arith.constant 0 : index
    %c0_77 = arith.constant 0 : index
    %c0_78 = arith.constant 0 : index
    %197 = vector.load %arg14[%c0_76, %c0_77, %c0_78] : memref<1x1x32xf32, #tpu.memory_space<vmem>>, vector<1x1x32xf32>
    %198 = vector.shape_cast %197 : vector<1x1x32xf32> to vector<1x32xf32>
    %199 = vector.broadcast %198 : vector<1x32xf32> to vector<8x32xf32>
    %200 = arith.addf %196, %199 : vector<8x32xf32>
    %201 = arith.addf %145, %200 : vector<8x32xf32>
    %c0_79 = arith.constant 0 : index
    %c0_80 = arith.constant 0 : index
    %202 = vector.load %arg20[%c0_79, %c0_80] : memref<8x32xf32, #tpu.memory_space<vmem>>, vector<8x32xf32>
    tpu.vector_store %arg20[%c0_79, %c0_80], %201 {strides = array<i32>} : memref<8x32xf32, #tpu.memory_space<vmem>>, vector<8x32xf32>,
    %c1_i32 = arith.constant 1 : i32
    %203 = arith.cmpi eq, %arg1, %c1_i32 : i32
    %204 = arith.extui %203 : i1 to i32
    %c0_i32_81 = arith.constant 0 : i32
    %205 = arith.cmpi ne, %204, %c0_i32_81 : i32
    scf.if %205 {
      %c0_82 = arith.constant 0 : index
      %c0_83 = arith.constant 0 : index
      %206 = vector.load %arg15[%c0_82, %c0_83] : memref<1x32xf32, #tpu.memory_space<vmem>>, vector<1x32xf32>
      %c0_84 = arith.constant 0 : index
      %c0_85 = arith.constant 0 : index
      %207 = vector.load %arg16[%c0_84, %c0_85] : memref<1x32xf32, #tpu.memory_space<vmem>>, vector<1x32xf32>
      %cst_86 = arith.constant dense<0.000000e+00> : vector<8xf32>
      %208 = vector.multi_reduction <add>, %201, %cst_86 [1] : vector<8x32xf32> to vector<8xf32>
      %209 = vector.shape_cast %208 : vector<8xf32> to vector<8x1xf32>
      %cst_87 = arith.constant 3.200000e+01 : f32
      %210 = vector.broadcast %cst_87 : f32 to vector<8x1xf32>
      %211 = arith.divf %209, %210 : vector<8x1xf32>
      %212 = vector.broadcast %211 : vector<8x1xf32> to vector<8x32xf32>
      %213 = arith.subf %201, %212 : vector<8x32xf32>
      %214 = arith.mulf %213, %213 : vector<8x32xf32>
      %cst_88 = arith.constant dense<0.000000e+00> : vector<8xf32>
      %215 = vector.multi_reduction <add>, %214, %cst_88 [1] : vector<8x32xf32> to vector<8xf32>
      %216 = vector.shape_cast %215 : vector<8xf32> to vector<8x1xf32>
      %cst_89 = arith.constant 3.200000e+01 : f32
      %217 = vector.broadcast %cst_89 : f32 to vector<8x1xf32>
      %218 = arith.divf %216, %217 : vector<8x1xf32>
      %219 = vector.broadcast %211 : vector<8x1xf32> to vector<8x32xf32>
      %220 = arith.subf %201, %219 : vector<8x32xf32>
      %cst_90 = arith.constant 9.99999974E-6 : f32
      %221 = vector.broadcast %cst_90 : f32 to vector<8x1xf32>
      %222 = arith.addf %218, %221 : vector<8x1xf32>
      %223 = math.rsqrt %222 : vector<8x1xf32>
      %224 = vector.broadcast %223 : vector<8x1xf32> to vector<8x32xf32>
      %225 = arith.mulf %220, %224 : vector<8x32xf32>
      %226 = vector.broadcast %206 : vector<1x32xf32> to vector<8x32xf32>
      %227 = arith.mulf %225, %226 : vector<8x32xf32>
      %228 = vector.broadcast %207 : vector<1x32xf32> to vector<8x32xf32>
      %229 = arith.addf %227, %228 : vector<8x32xf32>
      %230 = arith.truncf %229 : vector<8x32xf32> to vector<8x32xbf16>
      %c0_91 = arith.constant 0 : index
      %c0_92 = arith.constant 0 : index
      %231 = vector.load %arg17[%c0_91, %c0_92] : memref<32x128xbf16, #tpu.memory_space<vmem>>, vector<32x128xbf16>
      %cst_93 = arith.constant dense<0.000000e+00> : vector<8x128xf32>
      %232 = tpu.matmul %230, %231, %cst_93 {dimension_numbers = #tpu.dot_dimension_numbers<[1], [0], [0], [1], [0, 0, 1, 1], [], []>} : vector<8x32xbf16>, vector<32x128xbf16>, vector<8x128xf32> -> vector<8x128xf32>
      %c0_94 = arith.constant 0 : index
      %c0_95 = arith.constant 0 : index
      %233 = vector.load %arg18[%c0_94, %c0_95] : memref<1x128xf32, #tpu.memory_space<vmem>>, vector<1x128xf32>
      %234 = vector.broadcast %233 : vector<1x128xf32> to vector<8x128xf32>
      %235 = arith.addf %232, %234 : vector<8x128xf32>
      %c0_96 = arith.constant 0 : index
      %c0_97 = arith.constant 0 : index
      %c0_98 = arith.constant 0 : index
      %236 = vector.load %arg19[%c0_96, %c0_97, %c0_98] : memref<1x8x128xf32, #tpu.memory_space<vmem>>, vector<1x8x128xf32>
      %237 = vector.shape_cast %236 : vector<1x8x128xf32> to vector<8x128xf32>
      %238 = vector.shape_cast %235 : vector<8x128xf32> to vector<1x8x128xf32>
      tpu.vector_store %arg19[%c0_96, %c0_97, %c0_98], %238 {strides = array<i32>} : memref<1x8x128xf32, #tpu.memory_space<vmem>>, vector<1x8x128xf32>,
    } else {
    }
    return
  }
  func.func @transform_0(%arg0: i32, %arg1: i32) -> (i32, i32, i32) {
    %c0_i32 = arith.constant 0 : i32
    %c0_i32_0 = arith.constant 0 : i32
    %c0_i32_1 = arith.constant 0 : i32
    return %arg0, %c0_i32, %c0_i32_0 : i32, i32, i32
  }
  func.func @transform_1(%arg0: i32, %arg1: i32) -> (i32, i32, i32) {
    %c0_i32 = arith.constant 0 : i32
    %c0_i32_0 = arith.constant 0 : i32
    %c0_i32_1 = arith.constant 0 : i32
    return %arg1, %c0_i32, %c0_i32_0 : i32, i32, i32
  }
  func.func @transform_2(%arg0: i32, %arg1: i32) -> (i32, i32, i32) {
    %c0_i32 = arith.constant 0 : i32
    %c0_i32_0 = arith.constant 0 : i32
    %c0_i32_1 = arith.constant 0 : i32
    return %arg1, %c0_i32, %c0_i32_0 : i32, i32, i32
  }
  func.func @transform_3(%arg0: i32, %arg1: i32) -> (i32, i32, i32) {
    %c0_i32 = arith.constant 0 : i32
    %c0_i32_0 = arith.constant 0 : i32
    %c0_i32_1 = arith.constant 0 : i32
    return %arg1, %c0_i32, %c0_i32_0 : i32, i32, i32
  }
  func.func @transform_4(%arg0: i32, %arg1: i32) -> (i32, i32, i32) {
    %c0_i32 = arith.constant 0 : i32
    %c0_i32_0 = arith.constant 0 : i32
    %c0_i32_1 = arith.constant 0 : i32
    return %arg1, %c0_i32, %c0_i32_0 : i32, i32, i32
  }
  func.func @transform_5(%arg0: i32, %arg1: i32) -> (i32, i32, i32) {
    %c0_i32 = arith.constant 0 : i32
    %c0_i32_0 = arith.constant 0 : i32
    %c0_i32_1 = arith.constant 0 : i32
    return %arg1, %c0_i32, %c0_i32_0 : i32, i32, i32
  }
  func.func @transform_6(%arg0: i32, %arg1: i32) -> (i32, i32, i32) {
    %c0_i32 = arith.constant 0 : i32
    %c0_i32_0 = arith.constant 0 : i32
    %c0_i32_1 = arith.constant 0 : i32
    return %arg1, %c0_i32, %c0_i32_0 : i32, i32, i32
  }
  func.func @transform_7(%arg0: i32, %arg1: i32) -> (i32, i32, i32) {
    %c0_i32 = arith.constant 0 : i32
    %c0_i32_0 = arith.constant 0 : i32
    %c0_i32_1 = arith.constant 0 : i32
    return %arg1, %c0_i32, %c0_i32_0 : i32, i32, i32
  }
  func.func @transform_8(%arg0: i32, %arg1: i32) -> (i32, i32, i32) {
    %c0_i32 = arith.constant 0 : i32
    %c0_i32_0 = arith.constant 0 : i32
    %c0_i32_1 = arith.constant 0 : i32
    return %arg1, %c0_i32, %c0_i32_0 : i32, i32, i32
  }
  func.func @transform_9(%arg0: i32, %arg1: i32) -> (i32, i32, i32) {
    %c0_i32 = arith.constant 0 : i32
    %c0_i32_0 = arith.constant 0 : i32
    %c0_i32_1 = arith.constant 0 : i32
    return %arg1, %c0_i32, %c0_i32_0 : i32, i32, i32
  }
  func.func @transform_10(%arg0: i32, %arg1: i32) -> (i32, i32, i32) {
    %c0_i32 = arith.constant 0 : i32
    %c0_i32_0 = arith.constant 0 : i32
    %c0_i32_1 = arith.constant 0 : i32
    return %arg1, %c0_i32, %c0_i32_0 : i32, i32, i32
  }
  func.func @transform_11(%arg0: i32, %arg1: i32) -> (i32, i32, i32) {
    %c0_i32 = arith.constant 0 : i32
    %c0_i32_0 = arith.constant 0 : i32
    %c0_i32_1 = arith.constant 0 : i32
    return %arg1, %c0_i32, %c0_i32_0 : i32, i32, i32
  }
  func.func @transform_12(%arg0: i32, %arg1: i32) -> (i32, i32, i32) {
    %c0_i32 = arith.constant 0 : i32
    %c0_i32_0 = arith.constant 0 : i32
    %c0_i32_1 = arith.constant 0 : i32
    return %arg1, %c0_i32, %c0_i32_0 : i32, i32, i32
  }
  func.func @transform_13(%arg0: i32, %arg1: i32) -> (i32, i32) {
    %c0_i32 = arith.constant 0 : i32
    %c0_i32_0 = arith.constant 0 : i32
    %c0_i32_1 = arith.constant 0 : i32
    return %c0_i32, %c0_i32_0 : i32, i32
  }
  func.func @transform_14(%arg0: i32, %arg1: i32) -> (i32, i32) {
    %c0_i32 = arith.constant 0 : i32
    %c0_i32_0 = arith.constant 0 : i32
    %c0_i32_1 = arith.constant 0 : i32
    return %c0_i32, %c0_i32_0 : i32, i32
  }
  func.func @transform_15(%arg0: i32, %arg1: i32) -> (i32, i32) {
    %c0_i32 = arith.constant 0 : i32
    %c0_i32_0 = arith.constant 0 : i32
    %c0_i32_1 = arith.constant 0 : i32
    return %c0_i32, %c0_i32_0 : i32, i32
  }
  func.func @transform_16(%arg0: i32, %arg1: i32) -> (i32, i32) {
    %c0_i32 = arith.constant 0 : i32
    %c0_i32_0 = arith.constant 0 : i32
    %c0_i32_1 = arith.constant 0 : i32
    return %c0_i32, %c0_i32_0 : i32, i32
  }
  func.func @transform_17(%arg0: i32, %arg1: i32) -> (i32, i32, i32) {
    %c0_i32 = arith.constant 0 : i32
    %c0_i32_0 = arith.constant 0 : i32
    %c0_i32_1 = arith.constant 0 : i32
    return %arg0, %c0_i32, %c0_i32_0 : i32, i32, i32
  }
}

</mosaic_0001>

<llo_original>
// kernel: decoder_forward.1
$region0: #{decoder_forward.1}
  #allocation0 [shape = 'u32[]', space=smem, size = 0x4, offset = 0x4, fixed_abs, tag = 'smem constant byte address 0x4 - core index']
  #allocation1 [shape = 'u32[72,128]{1,0:T(1,128)}', space=vmem, size = 0x9000, scoped, tag = 'internal scratch']
  #allocation2 [shape = 'f32[8,32]{1,0:T(8,128)}', space=vmem, size = 0x1000, scoped, tag = 'scratch operand']
  %s0 = inlined_call_operand.hbm [shape: f32[2,8,32], index: 0, kind: input, shape index: {}]
  %s1 = inlined_call_operand.vmem [shape: f32[2,1,32], index: 1, kind: input, shape index: {}]
  %s2 = inlined_call_operand.vmem [shape: f32[2,1,32], index: 2, kind: input, shape index: {}]
  %s3 = inlined_call_operand.vmem [shape: bf16[2,32,96], index: 3, kind: input, shape index: {}]
  %s4 = inlined_call_operand.hbm [shape: f32[2,1,96], index: 4, kind: input, shape index: {}]
  %s5 = inlined_call_operand.vmem [shape: bf16[2,32,32], index: 5, kind: input, shape index: {}]
  %s6 = inlined_call_operand.hbm [shape: f32[2,1,32], index: 6, kind: input, shape index: {}]
  %s7 = inlined_call_operand.vmem [shape: f32[2,1,32], index: 7, kind: input, shape index: {}]
  %s8 = inlined_call_operand.hbm [shape: f32[2,1,32], index: 8, kind: input, shape index: {}]
  %s9 = inlined_call_operand.vmem [shape: bf16[2,32,64], index: 9, kind: input, shape index: {}]
  %s10 = inlined_call_operand.hbm [shape: f32[2,1,64], index: 10, kind: input, shape index: {}]
  %s11 = inlined_call_operand.vmem [shape: bf16[2,64,32], index: 11, kind: input, shape index: {}]
  %s12 = inlined_call_operand.hbm [shape: f32[2,1,32], index: 12, kind: input, shape index: {}]
  %s13 = inlined_call_operand.vmem [shape: f32[1,32], index: 13, kind: input, shape index: {}]
  %s14 = inlined_call_operand.vmem [shape: f32[1,32], index: 14, kind: input, shape index: {}]
  %s15 = inlined_call_operand.hbm [shape: bf16[32,128], index: 15, kind: input, shape index: {}]
  %s16 = inlined_call_operand.hbm [shape: f32[1,128], index: 16, kind: input, shape index: {}]
  %s17 = inlined_call_operand.vmem [shape: f32[2,8,128], index: 17, kind: output, shape index: {}]
  %s18 = sld [smem:[#allocation0]]
  $region141: #{decoder_forward.1} parent=0
    _
  %s20 = ssub.s32 1, %s18
  %s21 = scalar_select 0, %s20, %s18
  $region1: #{decoder_forward.1} parent=0
    #allocation3 [shape = 'u8[8192]{0}', space=vmem, size = 0x2000, scoped, tag = 'input window, operand 0']
    #allocation4 [shape = 's32[2]{0}', space=sflag, size = 0x8, scoped, tag = 'scoped memory for decoder_forward.1']
    #allocation5 [shape = 'u8[1024]{0}', space=vmem, size = 0x400, scoped, tag = 'input window, operand 4']
    #allocation6 [shape = 's32[2]{0}', space=sflag, size = 0x8, scoped, tag = 'scoped memory for decoder_forward.1']
    #allocation7 [shape = 'u8[1024]{0}', space=vmem, size = 0x400, scoped, tag = 'input window, operand 6']
    #allocation8 [shape = 'u8[1024]{0}', space=vmem, size = 0x400, scoped, tag = 'input window, operand 8']
    #allocation9 [shape = 's32[2]{0}', space=sflag, size = 0x8, scoped, tag = 'scoped memory for decoder_forward.1']
    #allocation10 [shape = 'u8[1024]{0}', space=vmem, size = 0x400, scoped, tag = 'input window, operand 10']
    #allocation11 [shape = 'u8[1024]{0}', space=vmem, size = 0x400, scoped, tag = 'input window, operand 12']
    #allocation12 [shape = 's32[2]{0}', space=sflag, size = 0x8, scoped, tag = 'scoped memory for decoder_forward.1']
    #allocation13 [shape = 'u8[8192]{0}', space=vmem, size = 0x2000, scoped, tag = 'input window, operand 15, single buffered']
    #allocation14 [shape = 'u8[512]{0}', space=vmem, size = 0x400, scoped, tag = 'input window, operand 16, single buffered']
    #allocation15 [shape = 's32[1]{0}', space=sflag, size = 0x4, scoped, tag = 'scoped memory for decoder_forward.1']
    %22 = vsyncpa [#allocation4], 0
    %s23 = scalar_lea.sflag [#allocation4], 1
    %24 = vsyncpa %s23, 0
    %25 = vsyncpa [#allocation6], 0
    %s26 = scalar_lea.sflag [#allocation6], 1
    %27 = vsyncpa %s26, 0
    %28 = vsyncpa [#allocation9], 0
    %s29 = scalar_lea.sflag [#allocation9], 1
    %30 = vsyncpa %s29, 0
    %31 = vsyncpa [#allocation12], 0
    %s32 = scalar_lea.sflag [#allocation12], 1
    %33 = vsyncpa %s32, 0
    %34 = vsyncpa [#allocation15], 0
    loop: start=0, step=1, limit=6
    $region2: #{decoder_forward.1} parent=1 // loop_pre_header
      _
    $region3: #{decoder_forward.1} parent=1 // loop_header
      %s36 = sphi 0, %s40
      %p37 = scmp.ge.s32.totalorder %s36, 6
      %s43 = sphi 0, %s55
      %s44 = sphi 0, %s51
      %s45 = sphi 0, %s43
      %s46 = sphi 0, %s44
      %s47 = sphi 0, %s45
      %s48 = sphi 0, %s46
      %s58 = sphi 0, %s60
      %s61 = sphi 0, %s58
      %s62 = sphi 0, %s61
      %s78 = sphi 0, %s62
      %s84 = sphi 0, %s86
      %s87 = sphi 0, %s84
      %s88 = sphi 0, %s87
      %s104 = sphi 0, %s88
      %s110 = sphi 0, %s112
      %s113 = sphi 0, %s110
      %s114 = sphi 0, %s113
      %s130 = sphi 0, %s114
      %s136 = sphi 0, %s138
      %s139 = sphi 0, %s136
      %s140 = sphi 0, %s139
      %s156 = sphi 0, %s140
      %s162 = sphi 0, %s164
      %s165 = sphi 0, %s162
      %s166 = sphi 0, %s165
      %s182 = sphi 0, %s166
      %s188 = sphi 0, %s190
      %s191 = sphi 0, %s188
      %s192 = sphi 0, %s191
      %s208 = sphi 0, %s192
      %s214 = sphi 0, %s216
      %s217 = sphi 0, %s214
      %s218 = sphi 0, %s217
      %s234 = sphi 0, %s218
      %s240 = sphi 0, %s242
      %s243 = sphi 0, %s240
      %s244 = sphi 0, %s243
      %s260 = sphi 0, %s244
      %s266 = sphi 0, %s268
      %s269 = sphi 0, %s266
      %s270 = sphi 0, %s269
      %s286 = sphi 0, %s270
      %s292 = sphi 0, %s294
      %s295 = sphi 0, %s292
      %s296 = sphi 0, %s295
      %s312 = sphi 0, %s296
      %s318 = sphi 0, %s320
      %s321 = sphi 0, %s318
      %s322 = sphi 0, %s321
      %s338 = sphi 0, %s322
      %s344 = sphi 0, %s346
      %s347 = sphi 0, %s344
      %s348 = sphi 0, %s347
      %s364 = sphi 0, %s348
      %s370 = sphi 0, %s372
      %s373 = sphi 0, %s370
      %s374 = sphi 0, %s373
      %s390 = sphi 0, %s374
      %s394 = sphi 0, %s394
      %s396 = sphi 0, %s394
      %s397 = sphi 0, %s396
      %s411 = sphi 0, %s397
      %s415 = sphi 0, %s415
      %s417 = sphi 0, %s415
      %s418 = sphi 0, %s417
      %s432 = sphi 0, %s418
      %s436 = sphi 0, %s436
      %s438 = sphi 0, %s436
      %s439 = sphi 0, %s438
      %s453 = sphi 0, %s439
      %s457 = sphi 0, %s457
      %s459 = sphi 0, %s457
      %s460 = sphi 0, %s459
      %s474 = sphi 0, %s460
      %s480 = sphi 0, %s482
      %s483 = sphi 0, %s480
      %s484 = sphi 0, %s483
      %s500 = sphi 0, %s484
    $region4: #{decoder_forward.1} parent=1 // loop_header_branch
      %39 = sbr.rel (%p37) target = $region8
    $region5: #{decoder_forward.1} parent=1 // loop_body
      %s41 = ssub.s32 %s36, 1
      %s42 = ssub.s32 %s36, 2
      %s49 = sadd.s32 1, %s44
      %p50 = scmp.ge.s32.totalorder %s49, 2
      %s51 = scalar_select %p50, 0, %s49
      %s52 = sadd.s32 1, %s43
      %s53 = scalar_select %p50, %s52, %s43
      %p54 = scmp.ge.s32.totalorder %s53, 2
      %s55 = scalar_select %p54, 0, %s53
      %s56 = ssub.s32 %s43, %s55
      %p57 = scmp.eq.s32.totalorder %s56, 0
      %s59 = sadd.s32 %s58, 1
      %s60 = scalar_select %p57, %s58, %s59
      %p63 = pneg %p57
      %p64 = scmp.eq.s32.totalorder %s36, 3
      %p65 = por %p63, %p64
      %p66 = scmp.ne.s32.totalorder %s58, %s61
      %p67 = scmp.eq.s32.totalorder %s36, 0
      %p68 = por %p66, %p67
      %p69 = scmp.ne.s32.totalorder %s58, %s61
      %p70 = scmp.eq.s32.totalorder %s41, 3
      %p71 = por %p69, %p70
      %p72 = scmp.ne.s32.totalorder %s61, %s62
      %p73 = scmp.eq.s32.totalorder %s41, 0
      %p74 = por %p72, %p73
      %p75 = scmp.ne.s32.totalorder %s61, %s62
      %p76 = scmp.eq.s32.totalorder %s42, 3
      %p77 = por %p75, %p76
      %p79 = scmp.ne.s32.totalorder %s62, %s78
      %p80 = scmp.eq.s32.totalorder %s42, 0
      %p81 = por %p79, %p80
      %s82 = ssub.s32 %s44, %s51
      %p83 = scmp.eq.s32.totalorder %s82, 0
      %s85 = sadd.s32 %s84, 1
      %s86 = scalar_select %p83, %s84, %s85
      %p89 = pneg %p83
      %p90 = scmp.eq.s32.totalorder %s36, 3
      %p91 = por %p89, %p90
      %p92 = scmp.ne.s32.totalorder %s84, %s87
      %p93 = scmp.eq.s32.totalorder %s36, 0
      %p94 = por %p92, %p93
      %p95 = scmp.ne.s32.totalorder %s84, %s87
      %p96 = scmp.eq.s32.totalorder %s41, 3
      %p97 = por %p95, %p96
      %p98 = scmp.ne.s32.totalorder %s87, %s88
      %p99 = scmp.eq.s32.totalorder %s41, 0
      %p100 = por %p98, %p99
      %p101 = scmp.ne.s32.totalorder %s87, %s88
      %p102 = scmp.eq.s32.totalorder %s42, 3
      %p103 = por %p101, %p102
      %p105 = scmp.ne.s32.totalorder %s88, %s104
      %p106 = scmp.eq.s32.totalorder %s42, 0
      %p107 = por %p105, %p106
      %s108 = ssub.s32 %s44, %s51
      %p109 = scmp.eq.s32.totalorder %s108, 0
      %s111 = sadd.s32 %s110, 1
      %s112 = scalar_select %p109, %s110, %s111
      %p115 = pneg %p109
      %p116 = scmp.eq.s32.totalorder %s36, 3
      %p117 = por %p115, %p116
      %p118 = scmp.ne.s32.totalorder %s110, %s113
      %p119 = scmp.eq.s32.totalorder %s36, 0
      %p120 = por %p118, %p119
      %p121 = scmp.ne.s32.totalorder %s110, %s113
      %p122 = scmp.eq.s32.totalorder %s41, 3
      %p123 = por %p121, %p122
      %p124 = scmp.ne.s32.totalorder %s113, %s114
      %p125 = scmp.eq.s32.totalorder %s41, 0
      %p126 = por %p124, %p125
      %p127 = scmp.ne.s32.totalorder %s113, %s114
      %p128 = scmp.eq.s32.totalorder %s42, 3
      %p129 = por %p127, %p128
      %p131 = scmp.ne.s32.totalorder %s114, %s130
      %p132 = scmp.eq.s32.totalorder %s42, 0
      %p133 = por %p131, %p132
      %s134 = ssub.s32 %s44, %s51
      %p135 = scmp.eq.s32.totalorder %s134, 0
      %s137 = sadd.s32 %s136, 1
      %s138 = scalar_select %p135, %s136, %s137
      %p141 = pneg %p135
      %p142 = scmp.eq.s32.totalorder %s36, 3
      %p143 = por %p141, %p142
      %p144 = scmp.ne.s32.totalorder %s136, %s139
      %p145 = scmp.eq.s32.totalorder %s36, 0
      %p146 = por %p144, %p145
      %p147 = scmp.ne.s32.totalorder %s136, %s139
      %p148 = scmp.eq.s32.totalorder %s41, 3
      %p149 = por %p147, %p148
      %p150 = scmp.ne.s32.totalorder %s139, %s140
      %p151 = scmp.eq.s32.totalorder %s41, 0
      %p152 = por %p150, %p151
      %p153 = scmp.ne.s32.totalorder %s139, %s140
      %p154 = scmp.eq.s32.totalorder %s42, 3
      %p155 = por %p153, %p154
      %p157 = scmp.ne.s32.totalorder %s140, %s156
      %p158 = scmp.eq.s32.totalorder %s42, 0
      %p159 = por %p157, %p158
      %s160 = ssub.s32 %s44, %s51
      %p161 = scmp.eq.s32.totalorder %s160, 0
      %s163 = sadd.s32 %s162, 1
      %s164 = scalar_select %p161, %s162, %s163
      %p167 = pneg %p161
      %p168 = scmp.eq.s32.totalorder %s36, 3
      %p169 = por %p167, %p168
      %p170 = scmp.ne.s32.totalorder %s162, %s165
      %p171 = scmp.eq.s32.totalorder %s36, 0
      %p172 = por %p170, %p171
      %p173 = scmp.ne.s32.totalorder %s162, %s165
      %p174 = scmp.eq.s32.totalorder %s41, 3
      %p175 = por %p173, %p174
      %p176 = scmp.ne.s32.totalorder %s165, %s166
      %p177 = scmp.eq.s32.totalorder %s41, 0
      %p178 = por %p176, %p177
      %p179 = scmp.ne.s32.totalorder %s165, %s166
      %p180 = scmp.eq.s32.totalorder %s42, 3
      %p181 = por %p179, %p180
      %p183 = scmp.ne.s32.totalorder %s166, %s182
      %p184 = scmp.eq.s32.totalorder %s42, 0
      %p185 = por %p183, %p184
      %s186 = ssub.s32 %s44, %s51
      %p187 = scmp.eq.s32.totalorder %s186, 0
      %s189 = sadd.s32 %s188, 1
      %s190 = scalar_select %p187, %s188, %s189
      %p193 = pneg %p187
      %p194 = scmp.eq.s32.totalorder %s36, 3
      %p195 = por %p193, %p194
      %p196 = scmp.ne.s32.totalorder %s188, %s191
      %p197 = scmp.eq.s32.totalorder %s36, 0
      %p198 = por %p196, %p197
      %p199 = scmp.ne.s32.totalorder %s188, %s191
      %p200 = scmp.eq.s32.totalorder %s41, 3
      %p201 = por %p199, %p200
      %p202 = scmp.ne.s32.totalorder %s191, %s192
      %p203 = scmp.eq.s32.totalorder %s41, 0
      %p204 = por %p202, %p203
      %p205 = scmp.ne.s32.totalorder %s191, %s192
      %p206 = scmp.eq.s32.totalorder %s42, 3
      %p207 = por %p205, %p206
      %p209 = scmp.ne.s32.totalorder %s192, %s208
      %p210 = scmp.eq.s32.totalorder %s42, 0
      %p211 = por %p209, %p210
      %s212 = ssub.s32 %s44, %s51
      %p213 = scmp.eq.s32.totalorder %s212, 0
      %s215 = sadd.s32 %s214, 1
      %s216 = scalar_select %p213, %s214, %s215
      %p219 = pneg %p213
      %p220 = scmp.eq.s32.totalorder %s36, 3
      %p221 = por %p219, %p220
      %p222 = scmp.ne.s32.totalorder %s214, %s217
      %p223 = scmp.eq.s32.totalorder %s36, 0
      %p224 = por %p222, %p223
      %p225 = scmp.ne.s32.totalorder %s214, %s217
      %p226 = scmp.eq.s32.totalorder %s41, 3
      %p227 = por %p225, %p226
      %p228 = scmp.ne.s32.totalorder %s217, %s218
      %p229 = scmp.eq.s32.totalorder %s41, 0
      %p230 = por %p228, %p229
      %p231 = scmp.ne.s32.totalorder %s217, %s218
      %p232 = scmp.eq.s32.totalorder %s42, 3
      %p233 = por %p231, %p232
      %p235 = scmp.ne.s32.totalorder %s218, %s234
      %p236 = scmp.eq.s32.totalorder %s42, 0
      %p237 = por %p235, %p236
      %s238 = ssub.s32 %s44, %s51
      %p239 = scmp.eq.s32.totalorder %s238, 0
      %s241 = sadd.s32 %s240, 1
      %s242 = scalar_select %p239, %s240, %s241
      %p245 = pneg %p239
      %p246 = scmp.eq.s32.totalorder %s36, 3
      %p247 = por %p245, %p246
      %p248 = scmp.ne.s32.totalorder %s240, %s243
      %p249 = scmp.eq.s32.totalorder %s36, 0
      %p250 = por %p248, %p249
      %p251 = scmp.ne.s32.totalorder %s240, %s243
      %p252 = scmp.eq.s32.totalorder %s41, 3
      %p253 = por %p251, %p252
      %p254 = scmp.ne.s32.totalorder %s243, %s244
      %p255 = scmp.eq.s32.totalorder %s41, 0
      %p256 = por %p254, %p255
      %p257 = scmp.ne.s32.totalorder %s243, %s244
      %p258 = scmp.eq.s32.totalorder %s42, 3
      %p259 = por %p257, %p258
      %p261 = scmp.ne.s32.totalorder %s244, %s260
      %p262 = scmp.eq.s32.totalorder %s42, 0
      %p263 = por %p261, %p262
      %s264 = ssub.s32 %s44, %s51
      %p265 = scmp.eq.s32.totalorder %s264, 0
      %s267 = sadd.s32 %s266, 1
      %s268 = scalar_select %p265, %s266, %s267
      %p271 = pneg %p265
      %p272 = scmp.eq.s32.totalorder %s36, 3
      %p273 = por %p271, %p272
      %p274 = scmp.ne.s32.totalorder %s266, %s269
      %p275 = scmp.eq.s32.totalorder %s36, 0
      %p276 = por %p274, %p275
      %p277 = scmp.ne.s32.totalorder %s266, %s269
      %p278 = scmp.eq.s32.totalorder %s41, 3
      %p279 = por %p277, %p278
      %p280 = scmp.ne.s32.totalorder %s269, %s270
      %p281 = scmp.eq.s32.totalorder %s41, 0
      %p282 = por %p280, %p281
      %p283 = scmp.ne.s32.totalorder %s269, %s270
      %p284 = scmp.eq.s32.totalorder %s42, 3
      %p285 = por %p283, %p284
      %p287 = scmp.ne.s32.totalorder %s270, %s286
      %p288 = scmp.eq.s32.totalorder %s42, 0
      %p289 = por %p287, %p288
      %s290 = ssub.s32 %s44, %s51
      %p291 = scmp.eq.s32.totalorder %s290, 0
      %s293 = sadd.s32 %s292, 1
      %s294 = scalar_select %p291, %s292, %s293
      %p297 = pneg %p291
      %p298 = scmp.eq.s32.totalorder %s36, 3
      %p299 = por %p297, %p298
      %p300 = scmp.ne.s32.totalorder %s292, %s295
      %p301 = scmp.eq.s32.totalorder %s36, 0
      %p302 = por %p300, %p301
      %p303 = scmp.ne.s32.totalorder %s292, %s295
      %p304 = scmp.eq.s32.totalorder %s41, 3
      %p305 = por %p303, %p304
      %p306 = scmp.ne.s32.totalorder %s295, %s296
      %p307 = scmp.eq.s32.totalorder %s41, 0
      %p308 = por %p306, %p307
      %p309 = scmp.ne.s32.totalorder %s295, %s296
      %p310 = scmp.eq.s32.totalorder %s42, 3
      %p311 = por %p309, %p310
      %p313 = scmp.ne.s32.totalorder %s296, %s312
      %p314 = scmp.eq.s32.totalorder %s42, 0
      %p315 = por %p313, %p314
      %s316 = ssub.s32 %s44, %s51
      %p317 = scmp.eq.s32.totalorder %s316, 0
      %s319 = sadd.s32 %s318, 1
      %s320 = scalar_select %p317, %s318, %s319
      %p323 = pneg %p317
      %p324 = scmp.eq.s32.totalorder %s36, 3
      %p325 = por %p323, %p324
      %p326 = scmp.ne.s32.totalorder %s318, %s321
      %p327 = scmp.eq.s32.totalorder %s36, 0
      %p328 = por %p326, %p327
      %p329 = scmp.ne.s32.totalorder %s318, %s321
      %p330 = scmp.eq.s32.totalorder %s41, 3
      %p331 = por %p329, %p330
      %p332 = scmp.ne.s32.totalorder %s321, %s322
      %p333 = scmp.eq.s32.totalorder %s41, 0
      %p334 = por %p332, %p333
      %p335 = scmp.ne.s32.totalorder %s321, %s322
      %p336 = scmp.eq.s32.totalorder %s42, 3
      %p337 = por %p335, %p336
      %p339 = scmp.ne.s32.totalorder %s322, %s338
      %p340 = scmp.eq.s32.totalorder %s42, 0
      %p341 = por %p339, %p340
      %s342 = ssub.s32 %s44, %s51
      %p343 = scmp.eq.s32.totalorder %s342, 0
      %s345 = sadd.s32 %s344, 1
      %s346 = scalar_select %p343, %s344, %s345
      %p349 = pneg %p343
      %p350 = scmp.eq.s32.totalorder %s36, 3
      %p351 = por %p349, %p350
      %p352 = scmp.ne.s32.totalorder %s344, %s347
      %p353 = scmp.eq.s32.totalorder %s36, 0
      %p354 = por %p352, %p353
      %p355 = scmp.ne.s32.totalorder %s344, %s347
      %p356 = scmp.eq.s32.totalorder %s41, 3
      %p357 = por %p355, %p356
      %p358 = scmp.ne.s32.totalorder %s347, %s348
      %p359 = scmp.eq.s32.totalorder %s41, 0
      %p360 = por %p358, %p359
      %p361 = scmp.ne.s32.totalorder %s347, %s348
      %p362 = scmp.eq.s32.totalorder %s42, 3
      %p363 = por %p361, %p362
      %p365 = scmp.ne.s32.totalorder %s348, %s364
      %p366 = scmp.eq.s32.totalorder %s42, 0
      %p367 = por %p365, %p366
      %s368 = ssub.s32 %s44, %s51
      %p369 = scmp.eq.s32.totalorder %s368, 0
      %s371 = sadd.s32 %s370, 1
      %s372 = scalar_select %p369, %s370, %s371
      %p375 = pneg %p369
      %p376 = scmp.eq.s32.totalorder %s36, 3
      %p377 = por %p375, %p376
      %p378 = scmp.ne.s32.totalorder %s370, %s373
      %p379 = scmp.eq.s32.totalorder %s36, 0
      %p380 = por %p378, %p379
      %p381 = scmp.ne.s32.totalorder %s370, %s373
      %p382 = scmp.eq.s32.totalorder %s41, 3
      %p383 = por %p381, %p382
      %p384 = scmp.ne.s32.totalorder %s373, %s374
      %p385 = scmp.eq.s32.totalorder %s41, 0
      %p386 = por %p384, %p385
      %p387 = scmp.ne.s32.totalorder %s373, %s374
      %p388 = scmp.eq.s32.totalorder %s42, 3
      %p389 = por %p387, %p388
      %p391 = scmp.ne.s32.totalorder %s374, %s390
      %p392 = scmp.eq.s32.totalorder %s42, 0
      %p393 = por %p391, %p392
      %s395 = sadd.s32 %s394, 1
      %p398 = scmp.eq.s32.totalorder %s36, 3
      %p399 = scmp.ne.s32.totalorder %s394, %s396
      %p400 = scmp.eq.s32.totalorder %s36, 0
      %p401 = por %p399, %p400
      %p402 = scmp.ne.s32.totalorder %s394, %s396
      %p403 = scmp.eq.s32.totalorder %s41, 3
      %p404 = por %p402, %p403
      %p405 = scmp.ne.s32.totalorder %s396, %s397
      %p406 = scmp.eq.s32.totalorder %s41, 0
      %p407 = por %p405, %p406
      %p408 = scmp.ne.s32.totalorder %s396, %s397
      %p409 = scmp.eq.s32.totalorder %s42, 3
      %p410 = por %p408, %p409
      %p412 = scmp.ne.s32.totalorder %s397, %s411
      %p413 = scmp.eq.s32.totalorder %s42, 0
      %p414 = por %p412, %p413
      %s416 = sadd.s32 %s415, 1
      %p419 = scmp.eq.s32.totalorder %s36, 3
      %p420 = scmp.ne.s32.totalorder %s415, %s417
      %p421 = scmp.eq.s32.totalorder %s36, 0
      %p422 = por %p420, %p421
      %p423 = scmp.ne.s32.totalorder %s415, %s417
      %p424 = scmp.eq.s32.totalorder %s41, 3
      %p425 = por %p423, %p424
      %p426 = scmp.ne.s32.totalorder %s417, %s418
      %p427 = scmp.eq.s32.totalorder %s41, 0
      %p428 = por %p426, %p427
      %p429 = scmp.ne.s32.totalorder %s417, %s418
      %p430 = scmp.eq.s32.totalorder %s42, 3
      %p431 = por %p429, %p430
      %p433 = scmp.ne.s32.totalorder %s418, %s432
      %p434 = scmp.eq.s32.totalorder %s42, 0
      %p435 = por %p433, %p434
      %s437 = sadd.s32 %s436, 1
      %p440 = scmp.eq.s32.totalorder %s36, 3
      %p441 = scmp.ne.s32.totalorder %s436, %s438
      %p442 = scmp.eq.s32.totalorder %s36, 0
      %p443 = por %p441, %p442
      %p444 = scmp.ne.s32.totalorder %s436, %s438
      %p445 = scmp.eq.s32.totalorder %s41, 3
      %p446 = por %p444, %p445
      %p447 = scmp.ne.s32.totalorder %s438, %s439
      %p448 = scmp.eq.s32.totalorder %s41, 0
      %p449 = por %p447, %p448
      %p450 = scmp.ne.s32.totalorder %s438, %s439
      %p451 = scmp.eq.s32.totalorder %s42, 3
      %p452 = por %p450, %p451
      %p454 = scmp.ne.s32.totalorder %s439, %s453
      %p455 = scmp.eq.s32.totalorder %s42, 0
      %p456 = por %p454, %p455
      %s458 = sadd.s32 %s457, 1
      %p461 = scmp.eq.s32.totalorder %s36, 3
      %p462 = scmp.ne.s32.totalorder %s457, %s459
      %p463 = scmp.eq.s32.totalorder %s36, 0
      %p464 = por %p462, %p463
      %p465 = scmp.ne.s32.totalorder %s457, %s459
      %p466 = scmp.eq.s32.totalorder %s41, 3
      %p467 = por %p465, %p466
      %p468 = scmp.ne.s32.totalorder %s459, %s460
      %p469 = scmp.eq.s32.totalorder %s41, 0
      %p470 = por %p468, %p469
      %p471 = scmp.ne.s32.totalorder %s459, %s460
      %p472 = scmp.eq.s32.totalorder %s42, 3
      %p473 = por %p471, %p472
      %p475 = scmp.ne.s32.totalorder %s460, %s474
      %p476 = scmp.eq.s32.totalorder %s42, 0
      %p477 = por %p475, %p476
      %s478 = ssub.s32 %s43, %s55
      %p479 = scmp.eq.s32.totalorder %s478, 0
      %s481 = sadd.s32 %s480, 1
      %s482 = scalar_select %p479, %s480, %s481
      %p485 = pneg %p479
      %p486 = scmp.eq.s32.totalorder %s36, 3
      %p487 = por %p485, %p486
      %p488 = scmp.ne.s32.totalorder %s480, %s483
      %p489 = scmp.eq.s32.totalorder %s36, 0
      %p490 = por %p488, %p489
      %p491 = scmp.ne.s32.totalorder %s480, %s483
      %p492 = scmp.eq.s32.totalorder %s41, 3
      %p493 = por %p491, %p492
      %p494 = scmp.ne.s32.totalorder %s483, %s484
      %p495 = scmp.eq.s32.totalorder %s41, 0
      %p496 = por %p494, %p495
      %p497 = scmp.ne.s32.totalorder %s483, %s484
      %p498 = scmp.eq.s32.totalorder %s42, 3
      %p499 = por %p497, %p498
      %p501 = scmp.ne.s32.totalorder %s484, %s500
      %p502 = scmp.eq.s32.totalorder %s42, 0
      %p503 = por %p501, %p502
      %p504 = scmp.le.s32.totalorder 1, %s36
      %p505 = scmp.lt.s32.totalorder %s36, 5
      %p506 = pnand %p504, %p505
      %p507 = pneg %p506
      // Predicated region
      $region9: #{decoder_forward.1} parent=5 // pred_check
        _
      $region10: #{decoder_forward.1} parent=5 // pred_check_branch
        %509 = sbr.rel (%p506) target = $region12
      $region11: #{decoder_forward.1} parent=5 // pred_region
        %s510 = ssub.s32 %s36, 1
        // Predicated region
        $region13: #{decoder_forward.1} parent=11 // pred_check
          %p511 = pneg %p407
        $region14: #{decoder_forward.1} parent=11 // pred_check_branch
          %513 = sbr.rel (%p511) target = $region16
        $region15: #{decoder_forward.1} parent=11 // pred_region
          _
        $region16: #{decoder_forward.1} parent=11 // pred_fallthru
          _
        // Predicated region
        $region17: #{decoder_forward.1} parent=11 // pred_check
          %p514 = pneg %p428
        $region18: #{decoder_forward.1} parent=11 // pred_check_branch
          %516 = sbr.rel (%p514) target = $region20
        $region19: #{decoder_forward.1} parent=11 // pred_region
          _
        $region20: #{decoder_forward.1} parent=11 // pred_fallthru
          _
        // Predicated region
        $region21: #{decoder_forward.1} parent=11 // pred_check
          %p517 = pneg %p449
        $region22: #{decoder_forward.1} parent=11 // pred_check_branch
          %519 = sbr.rel (%p517) target = $region24
        $region23: #{decoder_forward.1} parent=11 // pred_region
          %521 = vsyncadd [#allocation12], 0
          %s522 = sshll.u32 %s15, 4
          %s523 = int_to_ptr.hbm [resolvable:$true] %s522
          %s524 = sshll.u32 [#allocation13], 4
          %s525 = int_to_ptr.vmem [resolvable:$true] %s524
          %530 = dma.hbm_to_vmem [thread:$0]  %s523, 256, %s525, [#allocation12], 64, 64, 4
        $region24: #{decoder_forward.1} parent=11 // pred_fallthru
          _
        // Predicated region
        $region25: #{decoder_forward.1} parent=11 // pred_check
          %p531 = pneg %p470
        $region26: #{decoder_forward.1} parent=11 // pred_check_branch
          %533 = sbr.rel (%p531) target = $region28
        $region27: #{decoder_forward.1} parent=11 // pred_region
          %535 = vsyncadd [#allocation15], 0
          %s537 = sshll.u32 %s16, 4
          %s538 = int_to_ptr.hbm [resolvable:$true] %s537
          %s539 = sshll.u32 [#allocation14], 4
          %s540 = int_to_ptr.vmem [resolvable:$true] %s539
          %542 = dma.hbm_to_vmem [thread:$0]  %s538, 16, %s540, [#allocation15]
        $region28: #{decoder_forward.1} parent=11 // pred_fallthru
          _
      $region12: #{decoder_forward.1} parent=5 // pred_fallthru
        _
      %p543 = scmp.lt.s32.totalorder %s36, 4
      // Predicated region
      $region29: #{decoder_forward.1} parent=5 // pred_check
        %p544 = pneg %p543
      $region30: #{decoder_forward.1} parent=5 // pred_check_branch
        %546 = sbr.rel (%p544) target = $region32
      $region31: #{decoder_forward.1} parent=5 // pred_region
        // Predicated region
        $region33: #{decoder_forward.1} parent=31 // pred_check
          %p547 = pneg %p68
        $region34: #{decoder_forward.1} parent=31 // pred_check_branch
          %549 = sbr.rel (%p547) target = $region36
        $region35: #{decoder_forward.1} parent=31 // pred_region
          %s550 = sand.u32 %s58, 1
          %s551 = scalar_lea.sflag [#allocation4], %s550
          %s552 = sand.u32 %s58, 1
          %s553 = smul.addr %s552, 8
          %s554 = scalar_lea.vmem [#allocation3], %s553
          %556 = vsyncadd %s551, 0
          %s557 = smul.addr %s43, 8
          %s558 = scalar_lea.hbm %s0, %s557
          %s560 = sshll.u32 %s558, 4
          %s561 = int_to_ptr.hbm [resolvable:$true] %s560
          %s562 = sshll.u32 %s554, 4
          %s563 = int_to_ptr.vmem [resolvable:$true] %s562
          %565 = dma.hbm_to_vmem [thread:$0]  %s561, 128, %s563, %s551
        $region36: #{decoder_forward.1} parent=31 // pred_fallthru
          _
        // Predicated region
        $region37: #{decoder_forward.1} parent=31 // pred_check
          %p566 = pneg %p94
        $region38: #{decoder_forward.1} parent=31 // pred_check_branch
          %568 = sbr.rel (%p566) target = $region40
        $region39: #{decoder_forward.1} parent=31 // pred_region
          %p569 = scmp.lt.s32.totalorder %s44, 1
          %s570 = scalar_select %p569, %s44, 1
          %s571 = scalar_lea.vmem %s1, %s570
        $region40: #{decoder_forward.1} parent=31 // pred_fallthru
          _
        // Predicated region
        $region41: #{decoder_forward.1} parent=31 // pred_check
          %p572 = pneg %p120
        $region42: #{decoder_forward.1} parent=31 // pred_check_branch
          %574 = sbr.rel (%p572) target = $region44
        $region43: #{decoder_forward.1} parent=31 // pred_region
          %p575 = scmp.lt.s32.totalorder %s44, 1
          %s576 = scalar_select %p575, %s44, 1
          %s577 = scalar_lea.vmem %s2, %s576
        $region44: #{decoder_forward.1} parent=31 // pred_fallthru
          _
        // Predicated region
        $region45: #{decoder_forward.1} parent=31 // pred_check
          %p578 = pneg %p146
        $region46: #{decoder_forward.1} parent=31 // pred_check_branch
          %580 = sbr.rel (%p578) target = $region48
        $region47: #{decoder_forward.1} parent=31 // pred_region
          %p581 = scmp.lt.s32.totalorder %s44, 1
          %s582 = scalar_select %p581, %s44, 1
          %s583 = smul.addr %s582, 4
          %s584 = smul.addr %s583, 4
          %s585 = scalar_lea.vmem %s3, %s584
        $region48: #{decoder_forward.1} parent=31 // pred_fallthru
          _
        // Predicated region
        $region49: #{decoder_forward.1} parent=31 // pred_check
          %p586 = pneg %p172
        $region50: #{decoder_forward.1} parent=31 // pred_check_branch
          %588 = sbr.rel (%p586) target = $region52
        $region51: #{decoder_forward.1} parent=31 // pred_region
          %s589 = sand.u32 %s36, 1
          %s590 = scalar_lea.sflag [#allocation6], %s589
          %s591 = sand.u32 %s162, 1
          %s592 = scalar_lea.vmem [#allocation5], %s591
          %594 = vsyncadd %s590, 0
          %s595 = scalar_lea.hbm %s4, %s44
          %s597 = sshll.u32 %s595, 4
          %s598 = int_to_ptr.hbm [resolvable:$true] %s597
          %s599 = sshll.u32 %s592, 4
          %s600 = int_to_ptr.vmem [resolvable:$true] %s599
          %602 = dma.hbm_to_vmem [thread:$0]  %s598, 16, %s600, %s590
        $region52: #{decoder_forward.1} parent=31 // pred_fallthru
          _
        // Predicated region
        $region53: #{decoder_forward.1} parent=31 // pred_check
          %p603 = pneg %p198
        $region54: #{decoder_forward.1} parent=31 // pred_check_branch
          %605 = sbr.rel (%p603) target = $region56
        $region55: #{decoder_forward.1} parent=31 // pred_region
          %p606 = scmp.lt.s32.totalorder %s44, 1
          %s607 = scalar_select %p606, %s44, 1
          %s608 = smul.addr %s607, 4
          %s609 = smul.addr %s608, 4
          %s610 = scalar_lea.vmem %s5, %s609
        $region56: #{decoder_forward.1} parent=31 // pred_fallthru
          _
        // Predicated region
        $region57: #{decoder_forward.1} parent=31 // pred_check
          %p611 = pneg %p224
        $region58: #{decoder_forward.1} parent=31 // pred_check_branch
          %613 = sbr.rel (%p611) target = $region60
        $region59: #{decoder_forward.1} parent=31 // pred_region
          %s614 = sand.u32 %s36, 1
          %s615 = scalar_lea.sflag [#allocation6], %s614
          %s616 = sand.u32 %s214, 1
          %s617 = scalar_lea.vmem [#allocation7], %s616
          %619 = vsyncadd %s615, 0
          %s620 = scalar_lea.hbm %s6, %s44
          %s622 = sshll.u32 %s620, 4
          %s623 = int_to_ptr.hbm [resolvable:$true] %s622
          %s624 = sshll.u32 %s617, 4
          %s625 = int_to_ptr.vmem [resolvable:$true] %s624
          %627 = dma.hbm_to_vmem [thread:$0]  %s623, 16, %s625, %s615
        $region60: #{decoder_forward.1} parent=31 // pred_fallthru
          _
        // Predicated region
        $region61: #{decoder_forward.1} parent=31 // pred_check
          %p628 = pneg %p250
        $region62: #{decoder_forward.1} parent=31 // pred_check_branch
          %630 = sbr.rel (%p628) target = $region64
        $region63: #{decoder_forward.1} parent=31 // pred_region
          %p631 = scmp.lt.s32.totalorder %s44, 1
          %s632 = scalar_select %p631, %s44, 1
          %s633 = scalar_lea.vmem %s7, %s632
        $region64: #{decoder_forward.1} parent=31 // pred_fallthru
          _
        // Predicated region
        $region65: #{decoder_forward.1} parent=31 // pred_check
          %p634 = pneg %p276
        $region66: #{decoder_forward.1} parent=31 // pred_check_branch
          %636 = sbr.rel (%p634) target = $region68
        $region67: #{decoder_forward.1} parent=31 // pred_region
          %s637 = sand.u32 %s36, 1
          %s638 = scalar_lea.sflag [#allocation9], %s637
          %s639 = sand.u32 %s266, 1
          %s640 = scalar_lea.vmem [#allocation8], %s639
          %642 = vsyncadd %s638, 0
          %s643 = scalar_lea.hbm %s8, %s44
          %s645 = sshll.u32 %s643, 4
          %s646 = int_to_ptr.hbm [resolvable:$true] %s645
          %s647 = sshll.u32 %s640, 4
          %s648 = int_to_ptr.vmem [resolvable:$true] %s647
          %650 = dma.hbm_to_vmem [thread:$0]  %s646, 16, %s648, %s638
        $region68: #{decoder_forward.1} parent=31 // pred_fallthru
          _
        // Predicated region
        $region69: #{decoder_forward.1} parent=31 // pred_check
          %p651 = pneg %p302
        $region70: #{decoder_forward.1} parent=31 // pred_check_branch
          %653 = sbr.rel (%p651) target = $region72
        $region71: #{decoder_forward.1} parent=31 // pred_region
          %p654 = scmp.lt.s32.totalorder %s44, 1
          %s655 = scalar_select %p654, %s44, 1
          %s656 = smul.addr %s655, 4
          %s657 = smul.addr %s656, 4
          %s658 = scalar_lea.vmem %s9, %s657
        $region72: #{decoder_forward.1} parent=31 // pred_fallthru
          _
        // Predicated region
        $region73: #{decoder_forward.1} parent=31 // pred_check
          %p659 = pneg %p328
        $region74: #{decoder_forward.1} parent=31 // pred_check_branch
          %661 = sbr.rel (%p659) target = $region76
        $region75: #{decoder_forward.1} parent=31 // pred_region
          %s662 = sand.u32 %s36, 1
          %s663 = scalar_lea.sflag [#allocation9], %s662
          %s664 = sand.u32 %s318, 1
          %s665 = scalar_lea.vmem [#allocation10], %s664
          %667 = vsyncadd %s663, 0
          %s668 = scalar_lea.hbm %s10, %s44
          %s670 = sshll.u32 %s668, 4
          %s671 = int_to_ptr.hbm [resolvable:$true] %s670
          %s672 = sshll.u32 %s665, 4
          %s673 = int_to_ptr.vmem [resolvable:$true] %s672
          %675 = dma.hbm_to_vmem [thread:$0]  %s671, 16, %s673, %s663
        $region76: #{decoder_forward.1} parent=31 // pred_fallthru
          _
        // Predicated region
        $region77: #{decoder_forward.1} parent=31 // pred_check
          %p676 = pneg %p354
        $region78: #{decoder_forward.1} parent=31 // pred_check_branch
          %678 = sbr.rel (%p676) target = $region80
        $region79: #{decoder_forward.1} parent=31 // pred_region
          %p679 = scmp.lt.s32.totalorder %s44, 1
          %s680 = scalar_select %p679, %s44, 1
          %s681 = smul.addr %s680, 8
          %s682 = smul.addr %s681, 4
          %s683 = scalar_lea.vmem %s11, %s682
        $region80: #{decoder_forward.1} parent=31 // pred_fallthru
          _
        // Predicated region
        $region81: #{decoder_forward.1} parent=31 // pred_check
          %p684 = pneg %p380
        $region82: #{decoder_forward.1} parent=31 // pred_check_branch
          %686 = sbr.rel (%p684) target = $region84
        $region83: #{decoder_forward.1} parent=31 // pred_region
          %s687 = sand.u32 %s36, 1
          %s688 = scalar_lea.sflag [#allocation12], %s687
          %s689 = sand.u32 %s370, 1
          %s690 = scalar_lea.vmem [#allocation11], %s689
          %692 = vsyncadd %s688, 0
          %s693 = scalar_lea.hbm %s12, %s44
          %s695 = sshll.u32 %s693, 4
          %s696 = int_to_ptr.hbm [resolvable:$true] %s695
          %s697 = sshll.u32 %s690, 4
          %s698 = int_to_ptr.vmem [resolvable:$true] %s697
          %700 = dma.hbm_to_vmem [thread:$0]  %s696, 16, %s698, %s688
        $region84: #{decoder_forward.1} parent=31 // pred_fallthru
          _
      $region32: #{decoder_forward.1} parent=5 // pred_fallthru
        _
      %p701 = scmp.le.s32.totalorder 1, %s36
      %p702 = scmp.lt.s32.totalorder %s36, 5
      %p703 = pnand %p701, %p702
      %p704 = pneg %p703
      // Predicated region
      $region85: #{decoder_forward.1} parent=5 // pred_check
        _
      $region86: #{decoder_forward.1} parent=5 // pred_check_branch
        %706 = sbr.rel (%p703) target = $region88
      $region87: #{decoder_forward.1} parent=5 // pred_region
        %s707 = ssub.s32 %s36, 1
        %s708 = sand.u32 %s61, 1
        %s709 = scalar_lea.sflag [#allocation4], %s708
        %s710 = sand.u32 %s61, 1
        %s711 = smul.addr %s710, 8
        %s712 = scalar_lea.vmem [#allocation3], %s711
        // Predicated region
        $region89: #{decoder_forward.1} parent=87 // pred_check
          %p713 = pneg %p74
        $region90: #{decoder_forward.1} parent=87 // pred_check_branch
          %715 = sbr.rel (%p713) target = $region92
        $region91: #{decoder_forward.1} parent=87 // pred_region
          %717 = dma.done %s709, 128
        $region92: #{decoder_forward.1} parent=87 // pred_fallthru
          _
        %s718 = sand.u32 %s41, 1
        %s719 = scalar_lea.sflag [#allocation6], %s718
        %s720 = sand.u32 %s165, 1
        %s721 = scalar_lea.vmem [#allocation5], %s720
        // Predicated region
        $region93: #{decoder_forward.1} parent=87 // pred_check
          %p722 = pneg %p178
        $region94: #{decoder_forward.1} parent=87 // pred_check_branch
          %724 = sbr.rel (%p722) target = $region96
        $region95: #{decoder_forward.1} parent=87 // pred_region
          %726 = dma.done %s719, 16
        $region96: #{decoder_forward.1} parent=87 // pred_fallthru
          _
        %s727 = sand.u32 %s41, 1
        %s728 = scalar_lea.sflag [#allocation6], %s727
        %s729 = sand.u32 %s217, 1
        %s730 = scalar_lea.vmem [#allocation7], %s729
        // Predicated region
        $region97: #{decoder_forward.1} parent=87 // pred_check
          %p731 = pneg %p230
        $region98: #{decoder_forward.1} parent=87 // pred_check_branch
          %733 = sbr.rel (%p731) target = $region100
        $region99: #{decoder_forward.1} parent=87 // pred_region
          %735 = dma.done %s728, 16
        $region100: #{decoder_forward.1} parent=87 // pred_fallthru
          _
        %s736 = sand.u32 %s41, 1
        %s737 = scalar_lea.sflag [#allocation9], %s736
        %s738 = sand.u32 %s269, 1
        %s739 = scalar_lea.vmem [#allocation8], %s738
        // Predicated region
        $region101: #{decoder_forward.1} parent=87 // pred_check
          %p740 = pneg %p282
        $region102: #{decoder_forward.1} parent=87 // pred_check_branch
          %742 = sbr.rel (%p740) target = $region104
        $region103: #{decoder_forward.1} parent=87 // pred_region
          %744 = dma.done %s737, 16
        $region104: #{decoder_forward.1} parent=87 // pred_fallthru
          _
        %s745 = sand.u32 %s41, 1
        %s746 = scalar_lea.sflag [#allocation9], %s745
        %s747 = sand.u32 %s321, 1
        %s748 = scalar_lea.vmem [#allocation10], %s747
        // Predicated region
        $region105: #{decoder_forward.1} parent=87 // pred_check
          %p749 = pneg %p334
        $region106: #{decoder_forward.1} parent=87 // pred_check_branch
          %751 = sbr.rel (%p749) target = $region108
        $region107: #{decoder_forward.1} parent=87 // pred_region
          %753 = dma.done %s746, 16
        $region108: #{decoder_forward.1} parent=87 // pred_fallthru
          _
        %s754 = sand.u32 %s41, 1
        %s755 = scalar_lea.sflag [#allocation12], %s754
        %s756 = sand.u32 %s373, 1
        %s757 = scalar_lea.vmem [#allocation11], %s756
        // Predicated region
        $region109: #{decoder_forward.1} parent=87 // pred_check
          %p758 = pneg %p386
        $region110: #{decoder_forward.1} parent=87 // pred_check_branch
          %760 = sbr.rel (%p758) target = $region112
        $region111: #{decoder_forward.1} parent=87 // pred_region
          %762 = dma.done %s755, 16
        $region112: #{decoder_forward.1} parent=87 // pred_fallthru
          _
        // Predicated region
        $region113: #{decoder_forward.1} parent=87 // pred_check
          %p763 = pneg %p449
        $region114: #{decoder_forward.1} parent=87 // pred_check_branch
          %765 = sbr.rel (%p763) target = $region116
        $region115: #{decoder_forward.1} parent=87 // pred_region
          %767 = dma.done [#allocation12], 256
        $region116: #{decoder_forward.1} parent=87 // pred_fallthru
          _
        // Predicated region
        $region117: #{decoder_forward.1} parent=87 // pred_check
          %p768 = pneg %p470
        $region118: #{decoder_forward.1} parent=87 // pred_check_branch
          %770 = sbr.rel (%p768) target = $region120
        $region119: #{decoder_forward.1} parent=87 // pred_region
          %772 = dma.done [#allocation15], 16
        $region120: #{decoder_forward.1} parent=87 // pred_fallthru
          _
        %s773 = sand.u32 %s61, 1
        %s774 = scalar_lea.sflag [#allocation4], %s773
        %s775 = sand.u32 %s61, 1
        %s776 = smul.addr %s775, 8
        %s777 = scalar_lea.vmem [#allocation3], %s776
        %p778 = pneg %p74
        %p779 = pneg %p71
        %p780 = scmp.lt.s32.totalorder %s46, 1
        %s781 = scalar_select %p780, %s46, 1
        %s782 = scalar_lea.vmem %s1, %s781
        %p783 = pneg %p100
        %p784 = pneg %p97
        %p785 = scmp.lt.s32.totalorder %s46, 1
        %s786 = scalar_select %p785, %s46, 1
        %s787 = scalar_lea.vmem %s2, %s786
        %p788 = pneg %p126
        %p789 = pneg %p123
        %p790 = scmp.lt.s32.totalorder %s46, 1
        %s791 = scalar_select %p790, %s46, 1
        %s792 = smul.addr %s791, 4
        %s793 = smul.addr %s792, 4
        %s794 = scalar_lea.vmem %s3, %s793
        %p795 = pneg %p152
        %p796 = pneg %p149
        %s797 = sand.u32 %s41, 1
        %s798 = scalar_lea.sflag [#allocation6], %s797
        %s799 = sand.u32 %s165, 1
        %s800 = scalar_lea.vmem [#allocation5], %s799
        %p801 = pneg %p178
        %p802 = pneg %p175
        %p803 = scmp.lt.s32.totalorder %s46, 1
        %s804 = scalar_select %p803, %s46, 1
        %s805 = smul.addr %s804, 4
        %s806 = smul.addr %s805, 4
        %s807 = scalar_lea.vmem %s5, %s806
        %p808 = pneg %p204
        %p809 = pneg %p201
        %s810 = sand.u32 %s41, 1
        %s811 = scalar_lea.sflag [#allocation6], %s810
        %s812 = sand.u32 %s217, 1
        %s813 = scalar_lea.vmem [#allocation7], %s812
        %p814 = pneg %p230
        %p815 = pneg %p227
        %p816 = scmp.lt.s32.totalorder %s46, 1
        %s817 = scalar_select %p816, %s46, 1
        %s818 = scalar_lea.vmem %s7, %s817
        %p819 = pneg %p256
        %p820 = pneg %p253
        %s821 = sand.u32 %s41, 1
        %s822 = scalar_lea.sflag [#allocation9], %s821
        %s823 = sand.u32 %s269, 1
        %s824 = scalar_lea.vmem [#allocation8], %s823
        %p825 = pneg %p282
        %p826 = pneg %p279
        %p827 = scmp.lt.s32.totalorder %s46, 1
        %s828 = scalar_select %p827, %s46, 1
        %s829 = smul.addr %s828, 4
        %s830 = smul.addr %s829, 4
        %s831 = scalar_lea.vmem %s9, %s830
        %p832 = pneg %p308
        %p833 = pneg %p305
        %s834 = sand.u32 %s41, 1
        %s835 = scalar_lea.sflag [#allocation9], %s834
        %s836 = sand.u32 %s321, 1
        %s837 = scalar_lea.vmem [#allocation10], %s836
        %p838 = pneg %p334
        %p839 = pneg %p331
        %p840 = scmp.lt.s32.totalorder %s46, 1
        %s841 = scalar_select %p840, %s46, 1
        %s842 = smul.addr %s841, 8
        %s843 = smul.addr %s842, 4
        %s844 = scalar_lea.vmem %s11, %s843
        %p845 = pneg %p360
        %p846 = pneg %p357
        %s847 = sand.u32 %s41, 1
        %s848 = scalar_lea.sflag [#allocation12], %s847
        %s849 = sand.u32 %s373, 1
        %s850 = scalar_lea.vmem [#allocation11], %s849
        %p851 = pneg %p386
        %p852 = pneg %p383
        %p853 = pneg %p407
        %p854 = pneg %p404
        %p855 = pneg %p428
        %p856 = pneg %p425
        %p857 = pneg %p449
        %p858 = pneg %p446
        %p859 = pneg %p470
        %p860 = pneg %p467
        %p861 = pneg %p496
        %p862 = pneg %p493
        %p863 = scmp.lt.s32.totalorder %s45, 1
        %s864 = scalar_select %p863, %s45, 1
        %s865 = smul.addr %s864, 8
        %s866 = scalar_lea.vmem %s17, %s865
        %p867 = scmp.lt.s32.totalorder %s46, 1
        %s868 = scalar_select %p867, %s46, 1
        %s869 = scalar_lea.vmem %s1, %s868
        %p870 = scmp.lt.s32.totalorder %s46, 1
        %s871 = scalar_select %p870, %s46, 1
        %s872 = scalar_lea.vmem %s2, %s871
        %p873 = scmp.lt.s32.totalorder %s46, 1
        %s874 = scalar_select %p873, %s46, 1
        %s875 = smul.addr %s874, 4
        %s876 = smul.addr %s875, 4
        %s877 = scalar_lea.vmem %s3, %s876
        %p878 = scmp.lt.s32.totalorder %s46, 1
        %s879 = scalar_select %p878, %s46, 1
        %s880 = smul.addr %s879, 4
        %s881 = smul.addr %s880, 4
        %s882 = scalar_lea.vmem %s5, %s881
        %p883 = scmp.lt.s32.totalorder %s46, 1
        %s884 = scalar_select %p883, %s46, 1
        %s885 = scalar_lea.vmem %s7, %s884
        %p886 = scmp.lt.s32.totalorder %s46, 1
        %s887 = scalar_select %p886, %s46, 1
        %s888 = smul.addr %s887, 4
        %s889 = smul.addr %s888, 4
        %s890 = scalar_lea.vmem %s9, %s889
        %p891 = scmp.lt.s32.totalorder %s46, 1
        %s892 = scalar_select %p891, %s46, 1
        %s893 = smul.addr %s892, 8
        %s894 = smul.addr %s893, 4
        %s895 = scalar_lea.vmem %s11, %s894
        %p896 = scmp.lt.s32.totalorder %s45, 1
        %s897 = scalar_select %p896, %s45, 1
        %s898 = smul.addr %s897, 8
        %s899 = scalar_lea.vmem %s17, %s898
        %p901 = scmp.eq.s32.totalorder %s46, 0
        // Predicated region
        $region121: #{decoder_forward.1} parent=87 // pred_check
          %p902 = pneg %p901
        $region122: #{decoder_forward.1} parent=87 // pred_check_branch
          %904 = sbr.rel (%p902) target = $region124
        $region123: #{decoder_forward.1} parent=87 // pred_region
          %v905 = vld [vmem:[%s712] sm:$0xff]
          %vm906 = vcmask 261120
          %907 = vst.msk [vmem:[#allocation2] sm:$0xff] %vm906, %v905
        $region124: #{decoder_forward.1} parent=87 // pred_fallthru
          _
        %v908 = vld [vmem:[#allocation2] sm:$0xff]
        %v909 = vld [vmem:[%s869] sm:$0x1]
        %v910 = vld [vmem:[%s872] sm:$0x1]
        %vm911 = vcmask 261120
        %v912 = vsel %vm911, %v908, 0.0
        %913 = vadd.xlane.f32.xlu0 %v912
        %v914 = vpop.xlane.xlu0 %913
        %v915 = vrcp.pop 32.0
        %v916 = vmul.f32 32.0, %v915
        %v917 = vsub.f32 1.0, %v916
        %v918 = vmul.f32 %v915, %v917
        %v919 = vadd.f32 %v915, %v918
        %vm920 = vweird.f32 %v915
        %v921 = vsel %vm920, %v915, %v919
        %v922 = vmul.f32 %v914, %v921
        %v923 = vsub.f32 %v908, %v922
        %v924 = vmul.f32 %v923, %v923
        %v925 = vsel %vm911, %v924, 0.0
        %926 = vadd.xlane.f32.xlu0 %v925
        %v927 = vpop.xlane.xlu0 %926
        %v928 = vmul.f32 %v927, %v921
        %v929 = vadd.f32 %v928, 1e-05
        %v930 = vrsqrt.pop %v929
        %v931 = vmul.f32 %v930, %v929
        %v932 = vmul.f32 %v931, %v930
        %v933 = vmul.f32 0.5, %v932
        %v934 = vsub.f32 1.5, %v933
        %v935 = vmul.f32 %v930, %v934
        %vm936 = vweird.f32 %v929
        %vm937 = vweird.f32 %v930
        %vm938 = vmor %vm936, %vm937
        %v939 = vsel %vm938, %v930, %v935
        %v940 = vmul.f32 %v923, %v939
        %v942 = vperm.slane %v909, 0
        %v944 = vmul.f32 %v940, %v942
        %v946 = vperm.slane %v910, 0
        %v948 = vadd.f32 %v944, %v946
        %v949 = vpack.c.bf16 %v948, %v948
        %v950 = vld [vmem:[%s877] sm:$0xf]
        %v951 = vld [vmem:[%s877 + $0x4] sm:$0xf]
        %v952 = vld [vmem:[%s877 + $0x8] sm:$0xf]
        %v953 = vld [vmem:[%s877 + $0xc] sm:$0xf]
        %v954 = vld [vmem:[%s721] sm:$0x1]
        %v956 = vperm.slane %v954, 0
        %v962 = vunpack.c.l.b16 %v950
        %v963 = vunpack.c.l.b16 %v951
        %v964 = vunpack.c.l.b16 %v952
        %v965 = vunpack.c.l.b16 %v953
        %v966 = vpack.c.b16 %v963, %v962
        %v967 = vpack.c.b16 %v965, %v964
        %v971 = vsel %vm911, %v949, 0
        %973 = vmatpush.bf16.msra.mxu0 0
        %974 = vmatpush.bf16.msra.mxu0 0
        %975 = vmatpush.bf16.msra.mxu0 0
        %976 = vmatpush.bf16.msra.mxu0 0
        %977 = vmatpush.bf16.msra.mxu0 0
        %978 = vmatpush.bf16.msra.mxu0 0
        %979 = vmatpush.bf16.msra.mxu0 %v967
        %980 = vmatpush.bf16.msra.mxu0 %v966
        %981 = vmatmul.bf16.gmra.mxu0 %v971
        %v982 = vpop.f32.mrf.mxu0
        %v983 = vadd.f32 %v956, %v982
        %v984 = vpop.f32.mrf.mxu0
        %985 = vdwg.mxu0
        %v986 = vld [vmem:[%s882] sm:$0xf]
        %v987 = vld [vmem:[%s882 + $0x4] sm:$0xf]
        %v988 = vld [vmem:[%s882 + $0x8] sm:$0xf]
        %v989 = vld [vmem:[%s882 + $0xc] sm:$0xf]
        %v990 = vpack.c.bf16 %v983, %v983
        %992 = vrot.lane.b32.xlu0 %v990, 96
        %v993 = vpop.permute.xlu0 %992
        %vm994 = vcmask 64512
        %v996 = vsel %vm994, %v990, 0
        %v999 = vsel %vm994, %v993, 0
        %1001 = vmatpush.bf16.xpose.msra.mxu0 0
        %1002 = vmatpush.bf16.xpose.msra.mxu0 0
        %1003 = vmatpush.bf16.xpose.msra.mxu0 0
        %1004 = vmatpush.bf16.xpose.msra.mxu0 0
        %1005 = vmatpush.bf16.xpose.msra.mxu0 0
        %1006 = vmatpush.bf16.xpose.msra.mxu0 0
        %1007 = vmatpush.bf16.xpose.msra.mxu0 0
        %1008 = vmatpush.bf16.xpose.msra.mxu0 %v999
        %1009 = vmatmul.bf16.gmra.mxu0 %v996
        %v1010 = vpop.f32.mrf.mxu0
        %v1011 = vadd.f32 0.0, %v1010
        %v1012 = vpop.f32.mrf.mxu0
        %1013 = vdwg.mxu0
        %v1014 = vmul.f32 %v1011, 0.35355338
        %v1015 = vsel %vm994, %v1014, -inf
        %1016 = vmax.xlane.f32.xlu0 %v1015
        %v1017 = vpop.xlane.xlu0 %1016
        %v1018 = vsub.f32 %v1014, %v1017
        %v1019 = vmul.f32 %v1018, 1.442695
        %v1020 = vpow.pop %v1019
        %v1021 = vsel %vm994, %v1020, 0.0
        %1022 = vadd.xlane.f32.xlu0 %v1021
        %v1023 = vpop.xlane.xlu0 %1022
        %v1024 = vrcp.pop %v1023
        %v1025 = vmul.f32 %v1020, %v1024
        %v1026 = vpack.c.bf16 %v1025, %v1025
        %1027 = vrot.lane.b32.xlu0 %v990, 64
        %v1028 = vpop.permute.xlu0 %1027
        %v1030 = vsel %vm994, %v1026, 0
        %vm1032 = vcmask 1043456
        %v1034 = vsel %vm1032, %v1028, 0
        %1036 = vmatpush.bf16.msra.mxu0 0
        %1037 = vmatpush.bf16.msra.mxu0 0
        %1038 = vmatpush.bf16.msra.mxu0 0
        %1039 = vmatpush.bf16.msra.mxu0 0
        %1040 = vmatpush.bf16.msra.mxu0 0
        %1041 = vmatpush.bf16.msra.mxu0 0
        %1042 = vmatpush.bf16.msra.mxu0 0
        %1043 = vmatpush.bf16.msra.mxu0 %v1034
        %1044 = vmatmul.bf16.gmra.mxu0 %v1030
        %v1045 = vpop.f32.mrf.mxu0
        %v1046 = vadd.f32 0.0, %v1045
        %v1047 = vpop.f32.mrf.mxu0
        %1048 = vdwg.mxu0
        %v1049 = vpack.c.bf16 %v1046, %v1046
        %1050 = vrot.lane.b32.xlu0 %v990, 120
        %v1051 = vpop.permute.xlu0 %1050
        %1052 = vrot.lane.b32.xlu0 %v990, 88
        %v1053 = vpop.permute.xlu0 %1052
        %v1055 = vsel %vm994, %v1051, 0
        %v1058 = vsel %vm994, %v1053, 0
        %1060 = vmatpush.bf16.xpose.msra.mxu0 0
        %1061 = vmatpush.bf16.xpose.msra.mxu0 0
        %1062 = vmatpush.bf16.xpose.msra.mxu0 0
        %1063 = vmatpush.bf16.xpose.msra.mxu0 0
        %1064 = vmatpush.bf16.xpose.msra.mxu0 0
        %1065 = vmatpush.bf16.xpose.msra.mxu0 0
        %1066 = vmatpush.bf16.xpose.msra.mxu0 0
        %1067 = vmatpush.bf16.xpose.msra.mxu0 %v1058
        %1068 = vmatmul.bf16.gmra.mxu0 %v1055
        %v1069 = vpop.f32.mrf.mxu0
        %v1070 = vadd.f32 0.0, %v1069
        %v1071 = vpop.f32.mrf.mxu0
        %1072 = vdwg.mxu0
        %v1073 = vmul.f32 %v1070, 0.35355338
        %v1074 = vsel %vm994, %v1073, -inf
        %1075 = vmax.xlane.f32.xlu0 %v1074
        %v1076 = vpop.xlane.xlu0 %1075
        %v1077 = vsub.f32 %v1073, %v1076
        %v1078 = vmul.f32 %v1077, 1.442695
        %v1079 = vpow.pop %v1078
        %v1080 = vsel %vm994, %v1079, 0.0
        %1081 = vadd.xlane.f32.xlu0 %v1080
        %v1082 = vpop.xlane.xlu0 %1081
        %v1083 = vrcp.pop %v1082
        %v1084 = vmul.f32 %v1079, %v1083
        %v1085 = vpack.c.bf16 %v1084, %v1084
        %1086 = vrot.lane.b32.xlu0 %v990, 56
        %v1087 = vpop.permute.xlu0 %1086
        %v1089 = vsel %vm994, %v1085, 0
        %v1092 = vsel %vm1032, %v1087, 0
        %1094 = vmatpush.bf16.msra.mxu0 0
        %1095 = vmatpush.bf16.msra.mxu0 0
        %1096 = vmatpush.bf16.msra.mxu0 0
        %1097 = vmatpush.bf16.msra.mxu0 0
        %1098 = vmatpush.bf16.msra.mxu0 0
        %1099 = vmatpush.bf16.msra.mxu0 0
        %1100 = vmatpush.bf16.msra.mxu0 0
        %1101 = vmatpush.bf16.msra.mxu0 %v1092
        %1102 = vmatmul.bf16.gmra.mxu0 %v1089
        %v1103 = vpop.f32.mrf.mxu0
        %v1104 = vadd.f32 0.0, %v1103
        %v1105 = vpop.f32.mrf.mxu0
        %1106 = vdwg.mxu0
        %v1107 = vpack.c.bf16 %v1104, %v1104
        %v1109 = vsel %vm994, %v1107, 0
        %v1112 = vsel %vm1032, %v987, 0
        %1114 = vmatpush.bf16.msra.mxu0 0
        %1115 = vmatpush.bf16.msra.mxu0 0
        %1116 = vmatpush.bf16.msra.mxu0 0
        %1117 = vmatpush.bf16.msra.mxu0 0
        %1118 = vmatpush.bf16.msra.mxu0 0
        %1119 = vmatpush.bf16.msra.mxu0 0
        %1120 = vmatpush.bf16.msra.mxu0 0
        %1121 = vmatpush.bf16.msra.mxu0 %v1112
        %1122 = vmatmul.bf16.gmra.mxu0 %v1109
        %v1123 = vpop.f32.mrf.mxu0
        %v1124 = vadd.f32 0.0, %v1123
        %v1125 = vpop.f32.mrf.mxu0
        %1126 = vdwg.mxu0
        %v1128 = vsel %vm994, %v1049, 0
        %v1131 = vsel %vm1032, %v986, 0
        %1133 = vmatpush.bf16.msra.mxu0 0
        %1134 = vmatpush.bf16.msra.mxu0 0
        %1135 = vmatpush.bf16.msra.mxu0 0
        %1136 = vmatpush.bf16.msra.mxu0 0
        %1137 = vmatpush.bf16.msra.mxu0 0
        %1138 = vmatpush.bf16.msra.mxu0 0
        %1139 = vmatpush.bf16.msra.mxu0 0
        %1140 = vmatpush.bf16.msra.mxu0 %v1131
        %1141 = vmatmul.bf16.gmra.mxu0 %v1128
        %v1142 = vpop.f32.mrf.mxu0
        %v1143 = vadd.f32 %v1124, %v1142
        %v1144 = vpop.f32.mrf.mxu0
        %1145 = vdwg.mxu0
        %1146 = vrot.lane.b32.xlu0 %v990, 112
        %v1147 = vpop.permute.xlu0 %1146
        %1148 = vrot.lane.b32.xlu0 %v990, 80
        %v1149 = vpop.permute.xlu0 %1148
        %v1151 = vsel %vm994, %v1147, 0
        %v1154 = vsel %vm994, %v1149, 0
        %1156 = vmatpush.bf16.xpose.msra.mxu0 0
        %1157 = vmatpush.bf16.xpose.msra.mxu0 0
        %1158 = vmatpush.bf16.xpose.msra.mxu0 0
        %1159 = vmatpush.bf16.xpose.msra.mxu0 0
        %1160 = vmatpush.bf16.xpose.msra.mxu0 0
        %1161 = vmatpush.bf16.xpose.msra.mxu0 0
        %1162 = vmatpush.bf16.xpose.msra.mxu0 0
        %1163 = vmatpush.bf16.xpose.msra.mxu0 %v1154
        %1164 = vmatmul.bf16.gmra.mxu0 %v1151
        %v1165 = vpop.f32.mrf.mxu0
        %v1166 = vadd.f32 0.0, %v1165
        %v1167 = vpop.f32.mrf.mxu0
        %1168 = vdwg.mxu0
        %v1169 = vmul.f32 %v1166, 0.35355338
        %v1170 = vsel %vm994, %v1169, -inf
        %1171 = vmax.xlane.f32.xlu0 %v1170
        %v1172 = vpop.xlane.xlu0 %1171
        %v1173 = vsub.f32 %v1169, %v1172
        %v1174 = vmul.f32 %v1173, 1.442695
        %v1175 = vpow.pop %v1174
        %v1176 = vsel %vm994, %v1175, 0.0
        %1177 = vadd.xlane.f32.xlu0 %v1176
        %v1178 = vpop.xlane.xlu0 %1177
        %v1179 = vrcp.pop %v1178
        %v1180 = vmul.f32 %v1175, %v1179
        %v1181 = vpack.c.bf16 %v1180, %v1180
        %1182 = vrot.lane.b32.xlu0 %v990, 48
        %v1183 = vpop.permute.xlu0 %1182
        %v1185 = vsel %vm994, %v1181, 0
        %v1188 = vsel %vm1032, %v1183, 0
        %1190 = vmatpush.bf16.msra.mxu0 0
        %1191 = vmatpush.bf16.msra.mxu0 0
        %1192 = vmatpush.bf16.msra.mxu0 0
        %1193 = vmatpush.bf16.msra.mxu0 0
        %1194 = vmatpush.bf16.msra.mxu0 0
        %1195 = vmatpush.bf16.msra.mxu0 0
        %1196 = vmatpush.bf16.msra.mxu0 0
        %1197 = vmatpush.bf16.msra.mxu0 %v1188
        %1198 = vmatmul.bf16.gmra.mxu0 %v1185
        %v1199 = vpop.f32.mrf.mxu0
        %v1200 = vadd.f32 0.0, %v1199
        %v1201 = vpop.f32.mrf.mxu0
        %1202 = vdwg.mxu0
        %v1203 = vpack.c.bf16 %v1200, %v1200
        %v1205 = vsel %vm994, %v1203, 0
        %v1208 = vsel %vm1032, %v988, 0
        %1210 = vmatpush.bf16.msra.mxu0 0
        %1211 = vmatpush.bf16.msra.mxu0 0
        %1212 = vmatpush.bf16.msra.mxu0 0
        %1213 = vmatpush.bf16.msra.mxu0 0
        %1214 = vmatpush.bf16.msra.mxu0 0
        %1215 = vmatpush.bf16.msra.mxu0 0
        %1216 = vmatpush.bf16.msra.mxu0 0
        %1217 = vmatpush.bf16.msra.mxu0 %v1208
        %1218 = vmatmul.bf16.gmra.mxu0 %v1205
        %v1219 = vpop.f32.mrf.mxu0
        %v1220 = vadd.f32 0.0, %v1219
        %v1221 = vpop.f32.mrf.mxu0
        %1222 = vdwg.mxu0
        %v1223 = vadd.f32 %v1143, %v1220
        %1224 = vrot.lane.b32.xlu0 %v990, 104
        %v1225 = vpop.permute.xlu0 %1224
        %1226 = vrot.lane.b32.xlu0 %v990, 72
        %v1227 = vpop.permute.xlu0 %1226
        %v1229 = vsel %vm994, %v1225, 0
        %v1232 = vsel %vm994, %v1227, 0
        %1234 = vmatpush.bf16.xpose.msra.mxu0 0
        %1235 = vmatpush.bf16.xpose.msra.mxu0 0
        %1236 = vmatpush.bf16.xpose.msra.mxu0 0
        %1237 = vmatpush.bf16.xpose.msra.mxu0 0
        %1238 = vmatpush.bf16.xpose.msra.mxu0 0
        %1239 = vmatpush.bf16.xpose.msra.mxu0 0
        %1240 = vmatpush.bf16.xpose.msra.mxu0 0
        %1241 = vmatpush.bf16.xpose.msra.mxu0 %v1232
        %1242 = vmatmul.bf16.gmra.mxu0 %v1229
        %v1243 = vpop.f32.mrf.mxu0
        %v1244 = vadd.f32 0.0, %v1243
        %v1245 = vpop.f32.mrf.mxu0
        %1246 = vdwg.mxu0
        %v1247 = vmul.f32 %v1244, 0.35355338
        %v1248 = vsel %vm994, %v1247, -inf
        %1249 = vmax.xlane.f32.xlu0 %v1248
        %v1250 = vpop.xlane.xlu0 %1249
        %v1251 = vsub.f32 %v1247, %v1250
        %v1252 = vmul.f32 %v1251, 1.442695
        %v1253 = vpow.pop %v1252
        %v1254 = vsel %vm994, %v1253, 0.0
        %1255 = vadd.xlane.f32.xlu0 %v1254
        %v1256 = vpop.xlane.xlu0 %1255
        %v1257 = vrcp.pop %v1256
        %v1258 = vmul.f32 %v1253, %v1257
        %v1259 = vpack.c.bf16 %v1258, %v1258
        %1260 = vrot.lane.b32.xlu0 %v990, 40
        %v1261 = vpop.permute.xlu0 %1260
        %v1263 = vsel %vm994, %v1259, 0
        %v1266 = vsel %vm1032, %v1261, 0
        %1268 = vmatpush.bf16.msra.mxu0 0
        %1269 = vmatpush.bf16.msra.mxu0 0
        %1270 = vmatpush.bf16.msra.mxu0 0
        %1271 = vmatpush.bf16.msra.mxu0 0
        %1272 = vmatpush.bf16.msra.mxu0 0
        %1273 = vmatpush.bf16.msra.mxu0 0
        %1274 = vmatpush.bf16.msra.mxu0 0
        %1275 = vmatpush.bf16.msra.mxu0 %v1266
        %1276 = vmatmul.bf16.gmra.mxu0 %v1263
        %v1277 = vpop.f32.mrf.mxu0
        %v1278 = vadd.f32 0.0, %v1277
        %v1279 = vpop.f32.mrf.mxu0
        %1280 = vdwg.mxu0
        %v1281 = vpack.c.bf16 %v1278, %v1278
        %v1283 = vsel %vm994, %v1281, 0
        %v1286 = vsel %vm1032, %v989, 0
        %1288 = vmatpush.bf16.msra.mxu0 0
        %1289 = vmatpush.bf16.msra.mxu0 0
        %1290 = vmatpush.bf16.msra.mxu0 0
        %1291 = vmatpush.bf16.msra.mxu0 0
        %1292 = vmatpush.bf16.msra.mxu0 0
        %1293 = vmatpush.bf16.msra.mxu0 0
        %1294 = vmatpush.bf16.msra.mxu0 0
        %1295 = vmatpush.bf16.msra.mxu0 %v1286
        %1296 = vmatmul.bf16.gmra.mxu0 %v1283
        %v1297 = vpop.f32.mrf.mxu0
        %v1298 = vadd.f32 0.0, %v1297
        %v1299 = vpop.f32.mrf.mxu0
        %1300 = vdwg.mxu0
        %v1301 = vadd.f32 %v1223, %v1298
        %v1302 = vadd.f32 %v908, %v1301
        %v1303 = vld [vmem:[%s730] sm:$0x1]
        %v1305 = vperm.slane %v1303, 0
        %v1307 = vadd.f32 %v1302, %v1305
        %v1308 = vld [vmem:[%s885] sm:$0x1]
        %v1309 = vld [vmem:[%s739] sm:$0x1]
        %v1310 = vsel %vm911, %v1307, 0.0
        %1311 = vadd.xlane.f32.xlu0 %v1310
        %v1312 = vpop.xlane.xlu0 %1311
        %v1313 = vmul.f32 %v1312, %v921
        %v1314 = vsub.f32 %v1307, %v1313
        %v1315 = vmul.f32 %v1314, %v1314
        %v1316 = vsel %vm911, %v1315, 0.0
        %1317 = vadd.xlane.f32.xlu0 %v1316
        %v1318 = vpop.xlane.xlu0 %1317
        %v1319 = vmul.f32 %v1318, %v921
        %v1320 = vadd.f32 %v1319, 1e-05
        %v1321 = vrsqrt.pop %v1320
        %v1322 = vmul.f32 %v1321, %v1320
        %v1323 = vmul.f32 %v1322, %v1321
        %v1324 = vmul.f32 0.5, %v1323
        %v1325 = vsub.f32 1.5, %v1324
        %v1326 = vmul.f32 %v1321, %v1325
        %vm1327 = vweird.f32 %v1320
        %vm1328 = vweird.f32 %v1321
        %vm1329 = vmor %vm1327, %vm1328
        %v1330 = vsel %vm1329, %v1321, %v1326
        %v1331 = vmul.f32 %v1314, %v1330
        %v1333 = vperm.slane %v1308, 0
        %v1335 = vmul.f32 %v1331, %v1333
        %v1337 = vperm.slane %v1309, 0
        %v1339 = vadd.f32 %v1335, %v1337
        %v1340 = vpack.c.bf16 %v1339, %v1339
        %v1341 = vld [vmem:[%s890] sm:$0xf]
        %v1342 = vld [vmem:[%s890 + $0x4] sm:$0xf]
        %v1343 = vld [vmem:[%s890 + $0x8] sm:$0xf]
        %v1344 = vld [vmem:[%s890 + $0xc] sm:$0xf]
        %v1345 = vld [vmem:[%s748] sm:$0x1]
        %v1347 = vperm.slane %v1345, 0
        %v1353 = vunpack.c.l.b16 %v1341
        %v1354 = vunpack.c.l.b16 %v1342
        %v1355 = vunpack.c.l.b16 %v1343
        %v1356 = vunpack.c.l.b16 %v1344
        %v1357 = vpack.c.b16 %v1354, %v1353
        %v1358 = vpack.c.b16 %v1356, %v1355
        %v1362 = vsel %vm911, %v1340, 0
        %1364 = vmatpush.bf16.msra.mxu0 0
        %1365 = vmatpush.bf16.msra.mxu0 0
        %1366 = vmatpush.bf16.msra.mxu0 0
        %1367 = vmatpush.bf16.msra.mxu0 0
        %1368 = vmatpush.bf16.msra.mxu0 0
        %1369 = vmatpush.bf16.msra.mxu0 0
        %1370 = vmatpush.bf16.msra.mxu0 %v1358
        %1371 = vmatpush.bf16.msra.mxu0 %v1357
        %1372 = vmatmul.bf16.gmra.mxu0 %v1362
        %v1373 = vpop.f32.mrf.mxu0
        %v1374 = vadd.f32 %v1347, %v1373
        %v1375 = vpop.f32.mrf.mxu0
        %1376 = vdwg.mxu0
        %v1377 = vmul.f32 %v1374, %v1374
        %v1378 = vmul.f32 %v1374, %v1377
        %v1379 = vmul.f32 %v1378, 0.044715
        %v1380 = vadd.f32 %v1374, %v1379
        %v1381 = vmul.f32 %v1380, 0.7978846
        %v1382 = vtanh.pop %v1381
        %v1383 = vadd.f32 %v1382, 1.0
        %v1384 = vmul.f32 %v1383, 0.5
        %v1385 = vmul.f32 %v1374, %v1384
        %v1386 = vpack.c.bf16 %v1385, %v1385
        %v1387 = vld [vmem:[%s895] sm:$0xf]
        %v1388 = vld [vmem:[%s895 + $0x4] sm:$0xf]
        %v1389 = vld [vmem:[%s895 + $0x8] sm:$0xf]
        %v1390 = vld [vmem:[%s895 + $0xc] sm:$0xf]
        %v1391 = vld [vmem:[%s895 + $0x10] sm:$0xf]
        %v1392 = vld [vmem:[%s895 + $0x14] sm:$0xf]
        %v1393 = vld [vmem:[%s895 + $0x18] sm:$0xf]
        %v1394 = vld [vmem:[%s895 + $0x1c] sm:$0xf]
        %v1395 = vld [vmem:[%s757] sm:$0x1]
        %v1397 = vperm.slane %v1395, 0
        %v1407 = vunpack.c.l.b16 %v1387
        %v1408 = vunpack.c.l.b16 %v1388
        %v1409 = vunpack.c.l.b16 %v1389
        %v1410 = vunpack.c.l.b16 %v1390
        %v1411 = vunpack.c.l.b16 %v1391
        %v1412 = vunpack.c.l.b16 %v1392
        %v1413 = vunpack.c.l.b16 %v1393
        %v1414 = vunpack.c.l.b16 %v1394
        %v1415 = vpack.c.b16 %v1408, %v1407
        %v1416 = vpack.c.b16 %v1410, %v1409
        %v1417 = vpack.c.b16 %v1412, %v1411
        %v1418 = vpack.c.b16 %v1414, %v1413
        %vm1423 = vcmask 523264
        %v1425 = vsel %vm1423, %v1386, 0
        %1427 = vmatpush.bf16.msra.mxu0 0
        %1428 = vmatpush.bf16.msra.mxu0 0
        %1429 = vmatpush.bf16.msra.mxu0 0
        %1430 = vmatpush.bf16.msra.mxu0 0
        %1431 = vmatpush.bf16.msra.mxu0 %v1418
        %1432 = vmatpush.bf16.msra.mxu0 %v1417
        %1433 = vmatpush.bf16.msra.mxu0 %v1416
        %1434 = vmatpush.bf16.msra.mxu0 %v1415
        %1435 = vmatmul.bf16.gmra.mxu0 %v1425
        %v1436 = vpop.f32.mrf.mxu0
        %v1437 = vadd.f32 %v1397, %v1436
        %v1438 = vpop.f32.mrf.mxu0
        %1439 = vdwg.mxu0
        %v1440 = vadd.f32 %v1307, %v1437
        %1441 = vst.msk [vmem:[#allocation2] sm:$0xff] %vm911, %v1440
        %p1442 = scmp.eq.s32.totalorder %s46, 1
        // Predicated region
        $region125: #{decoder_forward.1} parent=87 // pred_check
          %p1443 = pneg %p1442
        $region126: #{decoder_forward.1} parent=87 // pred_check_branch
          %1445 = sbr.rel (%p1443) target = $region128
        $region127: #{decoder_forward.1} parent=87 // pred_region
          %v1446 = vld [vmem:[%s13] sm:$0x1]
          %v1447 = vld [vmem:[%s14] sm:$0x1]
          %v1448 = vsel %vm911, %v1440, 0.0
          %1449 = vadd.xlane.f32.xlu0 %v1448
          %v1450 = vpop.xlane.xlu0 %1449
          %v1451 = vmul.f32 %v1450, %v921
          %v1452 = vsub.f32 %v1440, %v1451
          %v1453 = vmul.f32 %v1452, %v1452
          %v1454 = vsel %vm911, %v1453, 0.0
          %1455 = vadd.xlane.f32.xlu0 %v1454
          %v1456 = vpop.xlane.xlu0 %1455
          %v1457 = vmul.f32 %v1456, %v921
          %v1458 = vadd.f32 %v1457, 1e-05
          %v1459 = vrsqrt.pop %v1458
          %v1460 = vmul.f32 %v1459, %v1458
          %v1461 = vmul.f32 %v1460, %v1459
          %v1462 = vmul.f32 0.5, %v1461
          %v1463 = vsub.f32 1.5, %v1462
          %v1464 = vmul.f32 %v1459, %v1463
          %vm1465 = vweird.f32 %v1458
          %vm1466 = vweird.f32 %v1459
          %vm1467 = vmor %vm1465, %vm1466
          %v1468 = vsel %vm1467, %v1459, %v1464
          %v1469 = vmul.f32 %v1452, %v1468
          %v1471 = vperm.slane %v1446, 0
          %v1473 = vmul.f32 %v1469, %v1471
          %v1475 = vperm.slane %v1447, 0
          %v1477 = vadd.f32 %v1473, %v1475
          %v1478 = vpack.c.bf16 %v1477, %v1477
          %v1479 = vld [vmem:[#allocation13] sm:$0xf]
          %v1480 = vld [vmem:[#allocation13 + $0x4] sm:$0xf]
          %v1481 = vld [vmem:[#allocation13 + $0x8] sm:$0xf]
          %v1482 = vld [vmem:[#allocation13 + $0xc] sm:$0xf]
          %v1483 = vld [vmem:[#allocation14] sm:$0x1]
          %v1485 = vperm.slane %v1483, 0
          %v1491 = vunpack.c.l.b16 %v1479
          %v1492 = vunpack.c.l.b16 %v1480
          %v1493 = vunpack.c.l.b16 %v1481
          %v1494 = vunpack.c.l.b16 %v1482
          %v1495 = vpack.c.b16 %v1492, %v1491
          %v1496 = vpack.c.b16 %v1494, %v1493
          %v1500 = vsel %vm911, %v1478, 0
          %1502 = vmatpush.bf16.msra.mxu0 0
          %1503 = vmatpush.bf16.msra.mxu0 0
          %1504 = vmatpush.bf16.msra.mxu0 0
          %1505 = vmatpush.bf16.msra.mxu0 0
          %1506 = vmatpush.bf16.msra.mxu0 0
          %1507 = vmatpush.bf16.msra.mxu0 0
          %1508 = vmatpush.bf16.msra.mxu0 %v1496
          %1509 = vmatpush.bf16.msra.mxu0 %v1495
          %1510 = vmatmul.bf16.gmra.mxu0 %v1500
          %v1511 = vpop.f32.mrf.mxu0
          %v1512 = vadd.f32 %v1485, %v1511
          %v1513 = vpop.f32.mrf.mxu0
          %1514 = vdwg.mxu0
          %1515 = vst [vmem:[%s899] sm:$0xff] %v1512
        $region128: #{decoder_forward.1} parent=87 // pred_fallthru
          _
        %p1516 = scmp.lt.s32.totalorder %s45, 1
        %s1517 = scalar_select %p1516, %s45, 1
        %s1518 = smul.addr %s1517, 8
        %s1519 = scalar_lea.vmem %s17, %s1518
        // Predicated region
        $region129: #{decoder_forward.1} parent=87 // pred_check
          %p1520 = pneg %p493
        $region130: #{decoder_forward.1} parent=87 // pred_check_branch
          %1522 = sbr.rel (%p1520) target = $region132
        $region131: #{decoder_forward.1} parent=87 // pred_region
          _
        $region132: #{decoder_forward.1} parent=87 // pred_fallthru
          _
      $region88: #{decoder_forward.1} parent=5 // pred_fallthru
        _
      %p1523 = scmp.le.s32.totalorder 2, %s36
      // Predicated region
      $region133: #{decoder_forward.1} parent=5 // pred_check
        %p1524 = pneg %p1523
      $region134: #{decoder_forward.1} parent=5 // pred_check_branch
        %1526 = sbr.rel (%p1524) target = $region136
      $region135: #{decoder_forward.1} parent=5 // pred_region
        %s1527 = ssub.s32 %s36, 2
        // Predicated region
        $region137: #{decoder_forward.1} parent=135 // pred_check
          %p1528 = pneg %p499
        $region138: #{decoder_forward.1} parent=135 // pred_check_branch
          %1530 = sbr.rel (%p1528) target = $region140
        $region139: #{decoder_forward.1} parent=135 // pred_region
          %p1531 = scmp.lt.s32.totalorder %s47, 1
          %s1532 = scalar_select %p1531, %s47, 1
          %s1533 = smul.addr %s1532, 8
          %s1534 = scalar_lea.vmem %s17, %s1533
        $region140: #{decoder_forward.1} parent=135 // pred_fallthru
          _
      $region136: #{decoder_forward.1} parent=5 // pred_fallthru
        _
    $region6: #{decoder_forward.1} parent=1 // loop_footer
      %s40 = sadd.s32 1, %s36
    $region7: #{decoder_forward.1} parent=1 // loop_footer_branch
      %35 = sbr.rel target = $region3
    $region8: #{decoder_forward.1} parent=1 // loop_exit
      _
    %1535 = vsyncpa [#allocation4], 1
    %s1536 = scalar_lea.sflag [#allocation4], 1
    %1537 = vsyncpa %s1536, 1
    %1538 = vsyncpa [#allocation6], 1
    %s1539 = scalar_lea.sflag [#allocation6], 1
    %1540 = vsyncpa %s1539, 1
    %1541 = vsyncpa [#allocation9], 1
    %s1542 = scalar_lea.sflag [#allocation9], 1
    %1543 = vsyncpa %s1542, 1
    %1544 = vsyncpa [#allocation12], 1
    %s1545 = scalar_lea.sflag [#allocation12], 1
    %1546 = vsyncpa %s1545, 1
    %1547 = vsyncpa [#allocation15], 1

</llo_original>
